<compile_context>
chip_gen: v5e
topology: v5e:2x2
jax: 0.10.0
libtpu: 0.0.40
codegen_flags: <defaults>
</compile_context>

<pallas_src>
import jax
import jax.numpy as jnp
from jax.experimental import pallas as pl
from jax.experimental.pallas import tpu as pltpu

HIDDEN = 256
MAX_TILE_B = 2048  # per-step batch tile cap (fits comfortably in 16 MiB VMEM)


def _critic_kernel(x_ref, a_ref, w1x_ref, w1a_ref, b1_ref, w2_ref, b2_ref,
                   w3_ref, b3_ref, w4_ref, b4_ref, q_ref):
    # fc1: x @ W1x + a @ W1a  (1/max_action already folded into W1a).
    acc = jnp.dot(x_ref[...], w1x_ref[...], preferred_element_type=jnp.float32)
    acc += jnp.dot(a_ref[...], w1a_ref[...], preferred_element_type=jnp.float32)
    h = jnp.maximum((acc + b1_ref[...]).astype(jnp.bfloat16), 0)
    # fc2
    acc = jnp.dot(h, w2_ref[...], preferred_element_type=jnp.float32)
    h = jnp.maximum((acc + b2_ref[...]).astype(jnp.bfloat16), 0)
    # fc3
    acc = jnp.dot(h, w3_ref[...], preferred_element_type=jnp.float32)
    h = jnp.maximum((acc + b3_ref[...]).astype(jnp.bfloat16), 0)
    # q_out (256 -> 1): VPU multiply + lane reduction, emitted lane-dense as an
    # (8, tile_b//8) block.  Reshaping h's leading (sublane) dim first is a
    # layout no-op, so the reduction result lands directly in the store layout.
    tb, hid = h.shape
    hr = h.reshape(8, tb // 8, hid).astype(jnp.float32)
    q = jnp.sum(hr * w4_ref[...], axis=-1) + b4_ref[...]
    q_ref[...] = q.astype(q_ref.dtype)


def init_params(key, obs_goal_dim, action_dim):
    """Deterministic synthetic parameters (uniform like PyTorch's default init).

    Weights stored as (in_features, out_features) so every layer is `act @ W + b`.
    """
    def lin(k, fan_in, shape):
        bound = 1.0 / jnp.sqrt(fan_in)
        return jax.random.uniform(k, shape, jnp.float32, -bound, bound)

    d_in = obs_goal_dim + action_dim
    ks = jax.random.split(key, 8)
    return {
        "w1": lin(ks[0], d_in, (d_in, HIDDEN)),
        "b1": lin(ks[1], d_in, (1, HIDDEN)),
        "w2": lin(ks[2], HIDDEN, (HIDDEN, HIDDEN)),
        "b2": lin(ks[3], HIDDEN, (1, HIDDEN)),
        "w3": lin(ks[4], HIDDEN, (HIDDEN, HIDDEN)),
        "b3": lin(ks[5], HIDDEN, (1, HIDDEN)),
        "w4": lin(ks[6], HIDDEN, (HIDDEN, 1)),
        "b4": lin(ks[7], HIDDEN, (1, 1)),
    }


def prepare_kernel_params(params, max_action, obs_goal_dim):
    """Split W1 into obs/goal vs. action parts, fold 1/max_action into the action
    part, and cast matmul weights to bf16 (biases + w4 stay f32)."""
    w1 = params["w1"]
    w1x = w1[:obs_goal_dim]
    w1a = w1[obs_goal_dim:] * (1.0 / max_action)
    return {
        "w1x": w1x.astype(jnp.bfloat16),
        "w1a": w1a.astype(jnp.bfloat16),
        "b1": params["b1"],
        "w2": params["w2"].astype(jnp.bfloat16),
        "b2": params["b2"],
        "w3": params["w3"].astype(jnp.bfloat16),
        "b3": params["b3"],
        "w4": params["w4"].reshape(1, HIDDEN).astype(jnp.float32),
        "b4": params["b4"],
    }


def _round_up(n, m):
    return ((n + m - 1) // m) * m


def _choose_tile_b(batch, max_tile_b):
    """MXU/sublane-friendly batch tile, amortizing grid-step overhead while
    keeping >=2 grid steps on multi-tile batches (for v7x's two TensorCores)."""
    tile = min(max_tile_b, _round_up(batch, 256))
    if batch > 256 and _round_up(batch, tile) // tile < 2:
        tile = _round_up((batch + 1) // 2, 256)
    return tile


def critic_forward(x, actions, kparams, *, max_tile_b=MAX_TILE_B):
    """x: (B, obs+goal) f32, actions: (B, action) f32 -> q: (B, 1) f32."""
    batch, d_xg = x.shape
    d_a = actions.shape[1]
    hidden = kparams["w2"].shape[0]

    tile_b = _choose_tile_b(batch, max_tile_b)
    n_tiles = pl.cdiv(batch, tile_b)
    b_pad = n_tiles * tile_b
    t8 = tile_b // 8

    # bf16 activations halve the streamed HBM read + input double-buffer VMEM.
    xb = x.astype(jnp.bfloat16)
    ab = actions.astype(jnp.bfloat16)
    if b_pad != batch:
        xb = jnp.pad(xb, ((0, b_pad - batch), (0, 0)))
        ab = jnp.pad(ab, ((0, b_pad - batch), (0, 0)))

    def resident(shape):  # weights / biases: same block every grid step
        return pl.BlockSpec(shape, lambda i: (0,) * len(shape))

    flops = 2 * b_pad * ((d_xg + d_a) * hidden + 2 * hidden * hidden + hidden)
    bytes_accessed = (
        b_pad * (d_xg + d_a) * 2 + b_pad * 4                  # bf16 in, f32 out
        + 2 * ((d_xg + d_a) * hidden + 2 * hidden * hidden)    # bf16 weights
        + 4 * (3 * hidden + hidden + 1))                       # f32 biases + w4

    q = pl.pallas_call(
        _critic_kernel,
        out_shape=jax.ShapeDtypeStruct((n_tiles * 8, t8), jnp.float32),
        grid=(n_tiles,),
        in_specs=[
            pl.BlockSpec((tile_b, d_xg), lambda i: (i, 0)),    # x stream
            pl.BlockSpec((tile_b, d_a), lambda i: (i, 0)),     # actions stream
            resident((d_xg, hidden)), resident((d_a, hidden)),  # w1x, w1a
            resident((1, hidden)),                              # b1
            resident((hidden, hidden)), resident((1, hidden)),  # w2, b2
            resident((hidden, hidden)), resident((1, hidden)),  # w3, b3
            resident((1, hidden)), resident((1, 1)),            # w4, b4
        ],
        out_specs=pl.BlockSpec((8, t8), lambda i: (i, 0)),      # lane-dense q
        compiler_params=pltpu.CompilerParams(
            dimension_semantics=("parallel",),
            vmem_limit_bytes=40 * 1024 * 1024),
        cost_estimate=pl.CostEstimate(
            flops=flops, transcendentals=0, bytes_accessed=bytes_accessed),
    )(xb, ab,
      kparams["w1x"], kparams["w1a"], kparams["b1"],
      kparams["w2"], kparams["b2"],
      kparams["w3"], kparams["b3"],
      kparams["w4"], kparams["b4"])

    return q.reshape(b_pad, 1)[:batch]


def reference_forward_f32(x, actions, params, max_action):
    """Pure-JAX f32 reference matching the PyTorch forward exactly."""
    xin = jnp.concatenate([x, actions / max_action], axis=1)
    h = jax.nn.relu(xin @ params["w1"] + params["b1"])
    h = jax.nn.relu(h @ params["w2"] + params["b2"])
    h = jax.nn.relu(h @ params["w3"] + params["b3"])
    return h @ params["w4"] + params["b4"]


def reference_forward_bf16(x, actions, kparams):
    """Reference mimicking the kernel's bf16-matmul / f32-accumulate math."""
    def mm(v, w):
        return jnp.dot(v.astype(jnp.bfloat16), w,
                       preferred_element_type=jnp.float32)

    acc = mm(x, kparams["w1x"]) + mm(actions, kparams["w1a"]) + kparams["b1"]
    h = jnp.maximum(acc.astype(jnp.bfloat16), 0)
    h = jnp.maximum((mm(h, kparams["w2"]) + kparams["b2"]).astype(jnp.bfloat16), 0)
    h = jnp.maximum((mm(h, kparams["w3"]) + kparams["b3"]).astype(jnp.bfloat16), 0)
    return (jnp.sum(h.astype(jnp.float32) * kparams["w4"], axis=-1,
                    keepdims=True) + kparams["b4"])


if __name__ == "__main__":
    # env_params: obs=10, goal=3, action=4, action_max=2.0 (small synthetic sizes)
    obs, goal, action = 10, 3, 4
    max_action = 2.0
    batch = 2

    key = jax.random.PRNGKey(0)
    k_params, k_x, k_a = jax.random.split(key, 3)
    params = init_params(k_params, obs + goal, action)
    kparams = prepare_kernel_params(params, max_action, obs + goal)

    x = jax.random.normal(k_x, (batch, obs + goal), jnp.float32)
    actions = jax.random.normal(k_a, (batch, action), jnp.float32)

    q = critic_forward(x, actions, kparams)
    q = jax.block_until_ready(q)
    assert q.shape == (batch, 1)

    # Tight check vs. a reference that uses the same bf16/f32 math as the kernel.
    q_bf16 = reference_forward_bf16(x, actions, kparams)
    assert jnp.allclose(q, q_bf16, atol=2e-3, rtol=2e-3), (q, q_bf16)

    # Loose sanity check vs. the exact f32 PyTorch-equivalent forward.
    q_f32 = reference_forward_f32(x, actions, params, max_action)
    assert jnp.allclose(q, q_f32, atol=5e-2, rtol=5e-2), (q, q_f32)

    print("KERNEL_OK")
</pallas_src>

<mosaic_0001>
module attributes {stable_mosaic.version = 11 : i64} {
  func.func @_critic_kernel(%arg0: i32, %arg1: memref<256x13xbf16, #tpu.memory_space<vmem>>, %arg2: memref<256x4xbf16, #tpu.memory_space<vmem>>, %arg3: memref<13x256xbf16, #tpu.memory_space<vmem>>, %arg4: memref<4x256xbf16, #tpu.memory_space<vmem>>, %arg5: memref<1x256xf32, #tpu.memory_space<vmem>>, %arg6: memref<256x256xbf16, #tpu.memory_space<vmem>>, %arg7: memref<1x256xf32, #tpu.memory_space<vmem>>, %arg8: memref<256x256xbf16, #tpu.memory_space<vmem>>, %arg9: memref<1x256xf32, #tpu.memory_space<vmem>>, %arg10: memref<1x256xf32, #tpu.memory_space<vmem>>, %arg11: memref<1x1xf32, #tpu.memory_space<vmem>>, %arg12: memref<8x32xf32, #tpu.memory_space<vmem>>) attributes {dimension_semantics = [#tpu.dimension_semantics<parallel>], iteration_bounds = array<i64: 1>, scalar_prefetch = 0 : i64, scratch_operands = 0 : i64, tpu.core_type = #tpu.core_type<tc>, window_params = [{transform_indices = @transform_0, window_bounds = array<i64: 256, 13>}, {transform_indices = @transform_1, window_bounds = array<i64: 256, 4>}, {pipeline_mode = #tpu.pipeline_mode<synchronous>, transform_indices = @transform_2, window_bounds = array<i64: 13, 256>}, {pipeline_mode = #tpu.pipeline_mode<synchronous>, transform_indices = @transform_3, window_bounds = array<i64: 4, 256>}, {pipeline_mode = #tpu.pipeline_mode<synchronous>, transform_indices = @transform_4, window_bounds = array<i64: 1, 256>}, {pipeline_mode = #tpu.pipeline_mode<synchronous>, transform_indices = @transform_5, window_bounds = array<i64: 256, 256>}, {pipeline_mode = #tpu.pipeline_mode<synchronous>, transform_indices = @transform_6, window_bounds = array<i64: 1, 256>}, {pipeline_mode = #tpu.pipeline_mode<synchronous>, transform_indices = @transform_7, window_bounds = array<i64: 256, 256>}, {pipeline_mode = #tpu.pipeline_mode<synchronous>, transform_indices = @transform_8, window_bounds = array<i64: 1, 256>}, {pipeline_mode = #tpu.pipeline_mode<synchronous>, transform_indices = @transform_9, window_bounds = array<i64: 1, 256>}, {pipeline_mode = #tpu.pipeline_mode<synchronous>, transform_indices = @transform_10, window_bounds = array<i64: 1, 1>}, {transform_indices = @transform_11, window_bounds = array<i64: 8, 32>}]} {
    %c0 = arith.constant 0 : index
    %c0_0 = arith.constant 0 : index
    %0 = vector.load %arg1[%c0, %c0_0] : memref<256x13xbf16, #tpu.memory_space<vmem>>, vector<256x13xbf16>
    %c0_1 = arith.constant 0 : index
    %c0_2 = arith.constant 0 : index
    %1 = vector.load %arg3[%c0_1, %c0_2] : memref<13x256xbf16, #tpu.memory_space<vmem>>, vector<13x256xbf16>
    %cst = arith.constant dense<0.000000e+00> : vector<256x256xf32>
    %2 = tpu.matmul %0, %1, %cst {dimension_numbers = #tpu.dot_dimension_numbers<[1], [0], [0], [1], [0, 0, 1, 1], [], []>} : vector<256x13xbf16>, vector<13x256xbf16>, vector<256x256xf32> -> vector<256x256xf32>
    %c0_3 = arith.constant 0 : index
    %c0_4 = arith.constant 0 : index
    %3 = vector.load %arg2[%c0_3, %c0_4] : memref<256x4xbf16, #tpu.memory_space<vmem>>, vector<256x4xbf16>
    %c0_5 = arith.constant 0 : index
    %c0_6 = arith.constant 0 : index
    %4 = vector.load %arg4[%c0_5, %c0_6] : memref<4x256xbf16, #tpu.memory_space<vmem>>, vector<4x256xbf16>
    %cst_7 = arith.constant dense<0.000000e+00> : vector<256x256xf32>
    %5 = tpu.matmul %3, %4, %cst_7 {dimension_numbers = #tpu.dot_dimension_numbers<[1], [0], [0], [1], [0, 0, 1, 1], [], []>} : vector<256x4xbf16>, vector<4x256xbf16>, vector<256x256xf32> -> vector<256x256xf32>
    %6 = arith.addf %2, %5 : vector<256x256xf32>
    %c0_8 = arith.constant 0 : index
    %c0_9 = arith.constant 0 : index
    %7 = vector.load %arg5[%c0_8, %c0_9] : memref<1x256xf32, #tpu.memory_space<vmem>>, vector<1x256xf32>
    %8 = vector.broadcast %7 : vector<1x256xf32> to vector<256x256xf32>
    %9 = arith.addf %6, %8 : vector<256x256xf32>
    %10 = arith.truncf %9 : vector<256x256xf32> to vector<256x256xbf16>
    %cst_10 = arith.constant 0.000000e+00 : bf16
    %11 = vector.broadcast %cst_10 : bf16 to vector<256x256xbf16>
    %12 = arith.maximumf %10, %11 : vector<256x256xbf16>
    %c0_11 = arith.constant 0 : index
    %c0_12 = arith.constant 0 : index
    %13 = vector.load %arg6[%c0_11, %c0_12] : memref<256x256xbf16, #tpu.memory_space<vmem>>, vector<256x256xbf16>
    %cst_13 = arith.constant dense<0.000000e+00> : vector<256x256xf32>
    %14 = tpu.matmul %12, %13, %cst_13 {dimension_numbers = #tpu.dot_dimension_numbers<[1], [0], [0], [1], [0, 0, 1, 1], [], []>} : vector<256x256xbf16>, vector<256x256xbf16>, vector<256x256xf32> -> vector<256x256xf32>
    %c0_14 = arith.constant 0 : index
    %c0_15 = arith.constant 0 : index
    %15 = vector.load %arg7[%c0_14, %c0_15] : memref<1x256xf32, #tpu.memory_space<vmem>>, vector<1x256xf32>
    %16 = vector.broadcast %15 : vector<1x256xf32> to vector<256x256xf32>
    %17 = arith.addf %14, %16 : vector<256x256xf32>
    %18 = arith.truncf %17 : vector<256x256xf32> to vector<256x256xbf16>
    %cst_16 = arith.constant 0.000000e+00 : bf16
    %19 = vector.broadcast %cst_16 : bf16 to vector<256x256xbf16>
    %20 = arith.maximumf %18, %19 : vector<256x256xbf16>
    %c0_17 = arith.constant 0 : index
    %c0_18 = arith.constant 0 : index
    %21 = vector.load %arg8[%c0_17, %c0_18] : memref<256x256xbf16, #tpu.memory_space<vmem>>, vector<256x256xbf16>
    %cst_19 = arith.constant dense<0.000000e+00> : vector<256x256xf32>
    %22 = tpu.matmul %20, %21, %cst_19 {dimension_numbers = #tpu.dot_dimension_numbers<[1], [0], [0], [1], [0, 0, 1, 1], [], []>} : vector<256x256xbf16>, vector<256x256xbf16>, vector<256x256xf32> -> vector<256x256xf32>
    %c0_20 = arith.constant 0 : index
    %c0_21 = arith.constant 0 : index
    %23 = vector.load %arg9[%c0_20, %c0_21] : memref<1x256xf32, #tpu.memory_space<vmem>>, vector<1x256xf32>
    %24 = vector.broadcast %23 : vector<1x256xf32> to vector<256x256xf32>
    %25 = arith.addf %22, %24 : vector<256x256xf32>
    %26 = arith.truncf %25 : vector<256x256xf32> to vector<256x256xbf16>
    %cst_22 = arith.constant 0.000000e+00 : bf16
    %27 = vector.broadcast %cst_22 : bf16 to vector<256x256xbf16>
    %28 = arith.maximumf %26, %27 : vector<256x256xbf16>
    %29 = vector.shape_cast %28 : vector<256x256xbf16> to vector<8x32x256xbf16>
    %30 = arith.extf %29 : vector<8x32x256xbf16> to vector<8x32x256xf32>
    %c0_23 = arith.constant 0 : index
    %c0_24 = arith.constant 0 : index
    %31 = vector.load %arg10[%c0_23, %c0_24] : memref<1x256xf32, #tpu.memory_space<vmem>>, vector<1x256xf32>
    %32 = vector.shape_cast %31 : vector<1x256xf32> to vector<1x1x256xf32>
    %33 = vector.broadcast %32 : vector<1x1x256xf32> to vector<8x32x256xf32>
    %34 = arith.mulf %30, %33 : vector<8x32x256xf32>
    %cst_25 = arith.constant dense<0.000000e+00> : vector<8x32xf32>
    %35 = vector.multi_reduction <add>, %34, %cst_25 [2] : vector<8x32x256xf32> to vector<8x32xf32>
    %c0_26 = arith.constant 0 : index
    %c0_27 = arith.constant 0 : index
    %36 = vector.load %arg11[%c0_26, %c0_27] : memref<1x1xf32, #tpu.memory_space<vmem>>, vector<1x1xf32>
    %37 = vector.broadcast %36 : vector<1x1xf32> to vector<8x32xf32>
    %38 = arith.addf %35, %37 : vector<8x32xf32>
    %c0_28 = arith.constant 0 : index
    %c0_29 = arith.constant 0 : index
    %39 = vector.load %arg12[%c0_28, %c0_29] : memref<8x32xf32, #tpu.memory_space<vmem>>, vector<8x32xf32>
    tpu.vector_store %arg12[%c0_28, %c0_29], %38 {strides = array<i32>} : memref<8x32xf32, #tpu.memory_space<vmem>>, vector<8x32xf32>,
    return
  }
  func.func @transform_0(%arg0: i32) -> (i32, i32) {
    %c0_i32 = arith.constant 0 : i32
    %c0_i32_0 = arith.constant 0 : i32
    return %arg0, %c0_i32 : i32, i32
  }
  func.func @transform_1(%arg0: i32) -> (i32, i32) {
    %c0_i32 = arith.constant 0 : i32
    %c0_i32_0 = arith.constant 0 : i32
    return %arg0, %c0_i32 : i32, i32
  }
  func.func @transform_2(%arg0: i32) -> (i32, i32) {
    %c0_i32 = arith.constant 0 : i32
    %c0_i32_0 = arith.constant 0 : i32
    %c0_i32_1 = arith.constant 0 : i32
    return %c0_i32, %c0_i32_0 : i32, i32
  }
  func.func @transform_3(%arg0: i32) -> (i32, i32) {
    %c0_i32 = arith.constant 0 : i32
    %c0_i32_0 = arith.constant 0 : i32
    %c0_i32_1 = arith.constant 0 : i32
    return %c0_i32, %c0_i32_0 : i32, i32
  }
  func.func @transform_4(%arg0: i32) -> (i32, i32) {
    %c0_i32 = arith.constant 0 : i32
    %c0_i32_0 = arith.constant 0 : i32
    %c0_i32_1 = arith.constant 0 : i32
    return %c0_i32, %c0_i32_0 : i32, i32
  }
  func.func @transform_5(%arg0: i32) -> (i32, i32) {
    %c0_i32 = arith.constant 0 : i32
    %c0_i32_0 = arith.constant 0 : i32
    %c0_i32_1 = arith.constant 0 : i32
    return %c0_i32, %c0_i32_0 : i32, i32
  }
  func.func @transform_6(%arg0: i32) -> (i32, i32) {
    %c0_i32 = arith.constant 0 : i32
    %c0_i32_0 = arith.constant 0 : i32
    %c0_i32_1 = arith.constant 0 : i32
    return %c0_i32, %c0_i32_0 : i32, i32
  }
  func.func @transform_7(%arg0: i32) -> (i32, i32) {
    %c0_i32 = arith.constant 0 : i32
    %c0_i32_0 = arith.constant 0 : i32
    %c0_i32_1 = arith.constant 0 : i32
    return %c0_i32, %c0_i32_0 : i32, i32
  }
  func.func @transform_8(%arg0: i32) -> (i32, i32) {
    %c0_i32 = arith.constant 0 : i32
    %c0_i32_0 = arith.constant 0 : i32
    %c0_i32_1 = arith.constant 0 : i32
    return %c0_i32, %c0_i32_0 : i32, i32
  }
  func.func @transform_9(%arg0: i32) -> (i32, i32) {
    %c0_i32 = arith.constant 0 : i32
    %c0_i32_0 = arith.constant 0 : i32
    %c0_i32_1 = arith.constant 0 : i32
    return %c0_i32, %c0_i32_0 : i32, i32
  }
  func.func @transform_10(%arg0: i32) -> (i32, i32) {
    %c0_i32 = arith.constant 0 : i32
    %c0_i32_0 = arith.constant 0 : i32
    %c0_i32_1 = arith.constant 0 : i32
    return %c0_i32, %c0_i32_0 : i32, i32
  }
  func.func @transform_11(%arg0: i32) -> (i32, i32) {
    %c0_i32 = arith.constant 0 : i32
    %c0_i32_0 = arith.constant 0 : i32
    return %arg0, %c0_i32 : i32, i32
  }
}

</mosaic_0001>

<llo_original>
// kernel: tpu_custom_call.1
$region0: #{tpu_custom_call.1}
  #allocation0 [shape = 'u32[]', space=smem, size = 0x4, offset = 0x4, fixed_abs, tag = 'smem constant byte address 0x4 - core index']
  #allocation1 [shape = 'u32[72,128]{1,0:T(1,128)}', space=vmem, size = 0x9000, scoped, tag = 'internal scratch']
  #allocation2 [shape = 'f32[1,1]{1,0:T(1,128)S(1)}', space=vmem, size = 0x200, scoped, tag = 'scoped memory for tpu_custom_call.1']
  %s0 = inlined_call_operand.vmem [shape: bf16[256,13], index: 0, kind: input, shape index: {}]
  %s1 = inlined_call_operand.vmem [shape: bf16[256,4], index: 1, kind: input, shape index: {}]
  %s2 = inlined_call_operand.vmem [shape: bf16[13,256], index: 2, kind: input, shape index: {}]
  %s3 = inlined_call_operand.vmem [shape: bf16[4,256], index: 3, kind: input, shape index: {}]
  %s4 = inlined_call_operand.vmem [shape: f32[1,256], index: 4, kind: input, shape index: {}]
  %s5 = inlined_call_operand.vmem [shape: bf16[256,256], index: 5, kind: input, shape index: {}]
  %s6 = inlined_call_operand.vmem [shape: f32[1,256], index: 6, kind: input, shape index: {}]
  %s7 = inlined_call_operand.hbm [shape: bf16[256,256], index: 7, kind: input, shape index: {}]
  %s8 = inlined_call_operand.vmem [shape: f32[1,256], index: 8, kind: input, shape index: {}]
  %s9 = inlined_call_operand.vmem [shape: f32[1,256], index: 9, kind: input, shape index: {}]
  %s10 = inlined_call_operand.<no memory space> [shape: f32[1,1], index: 10, kind: input, shape index: {}]
  %s11 = inlined_call_operand.hbm [shape: f32[8,32], index: 11, kind: output, shape index: {}]
  %s12 = sld [smem:[#allocation0]]
  $region58: #{tpu_custom_call.1} parent=0
    _
  %s14 = ssub.s32 1, %s12
  %s15 = scalar_select 0, %s14, %s12
  %v16 = vstv %s10
  %17 = vst [vmem:[#allocation2] sm:$0x1] %v16
  $region1: #{tpu_custom_call.1} parent=0
    #allocation3 [shape = 'u8[131072]{0}', space=vmem, size = 0x20000, scoped, tag = 'input window, operand 7, single buffered']
    #allocation4 [shape = 's32[1]{0}', space=sflag, size = 0x4, scoped, tag = 'scoped memory for tpu_custom_call.1']
    #allocation5 [shape = 's32[1]{0}', space=sflag, size = 0x4, scoped, tag = 'scoped memory for tpu_custom_call.1']
    #allocation6 [shape = 'u8[4096]{0}', space=vmem, size = 0x1000, scoped, tag = 'output window, operand 0, single buffered']
    %18 = vsyncpa [#allocation4], 0
    %19 = vsyncpa [#allocation5], 0
    // Predicated region
    $region2: #{tpu_custom_call.1} parent=1 // pred_check
      _
    $region3: #{tpu_custom_call.1} parent=1 // pred_check_branch
      %21 = sbr.rel (0) target = $region5
    $region4: #{tpu_custom_call.1} parent=1 // pred_region
      _
    $region5: #{tpu_custom_call.1} parent=1 // pred_fallthru
      _
    // Predicated region
    $region6: #{tpu_custom_call.1} parent=1 // pred_check
      _
    $region7: #{tpu_custom_call.1} parent=1 // pred_check_branch
      %23 = sbr.rel (0) target = $region9
    $region8: #{tpu_custom_call.1} parent=1 // pred_region
      _
    $region9: #{tpu_custom_call.1} parent=1 // pred_fallthru
      _
    // Predicated region
    $region10: #{tpu_custom_call.1} parent=1 // pred_check
      _
    $region11: #{tpu_custom_call.1} parent=1 // pred_check_branch
      %25 = sbr.rel (0) target = $region13
    $region12: #{tpu_custom_call.1} parent=1 // pred_region
      _
    $region13: #{tpu_custom_call.1} parent=1 // pred_fallthru
      _
    // Predicated region
    $region14: #{tpu_custom_call.1} parent=1 // pred_check
      _
    $region15: #{tpu_custom_call.1} parent=1 // pred_check_branch
      %27 = sbr.rel (0) target = $region17
    $region16: #{tpu_custom_call.1} parent=1 // pred_region
      _
    $region17: #{tpu_custom_call.1} parent=1 // pred_fallthru
      _
    // Predicated region
    $region18: #{tpu_custom_call.1} parent=1 // pred_check
      _
    $region19: #{tpu_custom_call.1} parent=1 // pred_check_branch
      %29 = sbr.rel (0) target = $region21
    $region20: #{tpu_custom_call.1} parent=1 // pred_region
      _
    $region21: #{tpu_custom_call.1} parent=1 // pred_fallthru
      _
    // Predicated region
    $region22: #{tpu_custom_call.1} parent=1 // pred_check
      _
    $region23: #{tpu_custom_call.1} parent=1 // pred_check_branch
      %31 = sbr.rel (0) target = $region25
    $region24: #{tpu_custom_call.1} parent=1 // pred_region
      _
    $region25: #{tpu_custom_call.1} parent=1 // pred_fallthru
      _
    // Predicated region
    $region26: #{tpu_custom_call.1} parent=1 // pred_check
      _
    $region27: #{tpu_custom_call.1} parent=1 // pred_check_branch
      %33 = sbr.rel (0) target = $region29
    $region28: #{tpu_custom_call.1} parent=1 // pred_region
      _
    $region29: #{tpu_custom_call.1} parent=1 // pred_fallthru
      _
    // Predicated region
    $region30: #{tpu_custom_call.1} parent=1 // pred_check
      _
    $region31: #{tpu_custom_call.1} parent=1 // pred_check_branch
      %35 = sbr.rel (0) target = $region33
    $region32: #{tpu_custom_call.1} parent=1 // pred_region
      %37 = vsyncadd [#allocation4], 0
      %s38 = sshll.u32 %s7, 4
      %s39 = int_to_ptr.hbm [resolvable:$true] %s38
      %s40 = sshll.u32 [#allocation3], 4
      %s41 = int_to_ptr.vmem [resolvable:$true] %s40
      %46 = dma.hbm_to_vmem [thread:$0]  %s39, 4096, %s41, [#allocation4], 128, 128, 8
    $region33: #{tpu_custom_call.1} parent=1 // pred_fallthru
      _
    // Predicated region
    $region34: #{tpu_custom_call.1} parent=1 // pred_check
      _
    $region35: #{tpu_custom_call.1} parent=1 // pred_check_branch
      %48 = sbr.rel (0) target = $region37
    $region36: #{tpu_custom_call.1} parent=1 // pred_region
      _
    $region37: #{tpu_custom_call.1} parent=1 // pred_fallthru
      _
    // Predicated region
    $region38: #{tpu_custom_call.1} parent=1 // pred_check
      _
    $region39: #{tpu_custom_call.1} parent=1 // pred_check_branch
      %50 = sbr.rel (0) target = $region41
    $region40: #{tpu_custom_call.1} parent=1 // pred_region
      _
    $region41: #{tpu_custom_call.1} parent=1 // pred_fallthru
      _
    // Predicated region
    $region42: #{tpu_custom_call.1} parent=1 // pred_check
      _
    $region43: #{tpu_custom_call.1} parent=1 // pred_check_branch
      %52 = sbr.rel (0) target = $region45
    $region44: #{tpu_custom_call.1} parent=1 // pred_region
      _
    $region45: #{tpu_custom_call.1} parent=1 // pred_fallthru
      _
    // Predicated region
    $region46: #{tpu_custom_call.1} parent=1 // pred_check
      _
    $region47: #{tpu_custom_call.1} parent=1 // pred_check_branch
      %54 = sbr.rel (0) target = $region49
    $region48: #{tpu_custom_call.1} parent=1 // pred_region
      %56 = dma.done [#allocation4], 4096
    $region49: #{tpu_custom_call.1} parent=1 // pred_fallthru
      _
    %v58 = vld [vmem:[%s0] sm:$0xf]
    %v59 = vld [vmem:[%s0 + $0x4] sm:$0xf]
    %v60 = vld [vmem:[%s0 + $0x8] sm:$0xf]
    %v61 = vld [vmem:[%s0 + $0xc] sm:$0xf]
    %v62 = vld [vmem:[%s0 + $0x10] sm:$0xf]
    %v63 = vld [vmem:[%s0 + $0x14] sm:$0xf]
    %v64 = vld [vmem:[%s0 + $0x18] sm:$0xf]
    %v65 = vld [vmem:[%s0 + $0x1c] sm:$0xf]
    %v66 = vld [vmem:[%s0 + $0x20] sm:$0xf]
    %v67 = vld [vmem:[%s0 + $0x24] sm:$0xf]
    %v68 = vld [vmem:[%s0 + $0x28] sm:$0xf]
    %v69 = vld [vmem:[%s0 + $0x2c] sm:$0xf]
    %v70 = vld [vmem:[%s0 + $0x30] sm:$0xf]
    %v71 = vld [vmem:[%s0 + $0x34] sm:$0xf]
    %v72 = vld [vmem:[%s0 + $0x38] sm:$0xf]
    %v73 = vld [vmem:[%s0 + $0x3c] sm:$0xf]
    %v74 = vld [vmem:[%s0 + $0x40] sm:$0xf]
    %v75 = vld [vmem:[%s0 + $0x44] sm:$0xf]
    %v76 = vld [vmem:[%s0 + $0x48] sm:$0xf]
    %v77 = vld [vmem:[%s0 + $0x4c] sm:$0xf]
    %v78 = vld [vmem:[%s0 + $0x50] sm:$0xf]
    %v79 = vld [vmem:[%s0 + $0x54] sm:$0xf]
    %v80 = vld [vmem:[%s0 + $0x58] sm:$0xf]
    %v81 = vld [vmem:[%s0 + $0x5c] sm:$0xf]
    %v82 = vld [vmem:[%s0 + $0x60] sm:$0xf]
    %v83 = vld [vmem:[%s0 + $0x64] sm:$0xf]
    %v84 = vld [vmem:[%s0 + $0x68] sm:$0xf]
    %v85 = vld [vmem:[%s0 + $0x6c] sm:$0xf]
    %v86 = vld [vmem:[%s0 + $0x70] sm:$0xf]
    %v87 = vld [vmem:[%s0 + $0x74] sm:$0xf]
    %v88 = vld [vmem:[%s0 + $0x78] sm:$0xf]
    %v89 = vld [vmem:[%s0 + $0x7c] sm:$0xf]
    %v90 = vld [vmem:[%s2] sm:$0xff]
    %v91 = vld [vmem:[%s2 + $0x8] sm:$0x77]
    %v92 = vld [vmem:[%s1] sm:$0xf]
    %v93 = vld [vmem:[%s1 + $0x4] sm:$0xf]
    %v94 = vld [vmem:[%s1 + $0x8] sm:$0xf]
    %v95 = vld [vmem:[%s1 + $0xc] sm:$0xf]
    %v96 = vld [vmem:[%s1 + $0x10] sm:$0xf]
    %v97 = vld [vmem:[%s1 + $0x14] sm:$0xf]
    %v98 = vld [vmem:[%s1 + $0x18] sm:$0xf]
    %v99 = vld [vmem:[%s1 + $0x1c] sm:$0xf]
    %v100 = vld [vmem:[%s1 + $0x20] sm:$0xf]
    %v101 = vld [vmem:[%s1 + $0x24] sm:$0xf]
    %v102 = vld [vmem:[%s1 + $0x28] sm:$0xf]
    %v103 = vld [vmem:[%s1 + $0x2c] sm:$0xf]
    %v104 = vld [vmem:[%s1 + $0x30] sm:$0xf]
    %v105 = vld [vmem:[%s1 + $0x34] sm:$0xf]
    %v106 = vld [vmem:[%s1 + $0x38] sm:$0xf]
    %v107 = vld [vmem:[%s1 + $0x3c] sm:$0xf]
    %v108 = vld [vmem:[%s1 + $0x40] sm:$0xf]
    %v109 = vld [vmem:[%s1 + $0x44] sm:$0xf]
    %v110 = vld [vmem:[%s1 + $0x48] sm:$0xf]
    %v111 = vld [vmem:[%s1 + $0x4c] sm:$0xf]
    %v112 = vld [vmem:[%s1 + $0x50] sm:$0xf]
    %v113 = vld [vmem:[%s1 + $0x54] sm:$0xf]
    %v114 = vld [vmem:[%s1 + $0x58] sm:$0xf]
    %v115 = vld [vmem:[%s1 + $0x5c] sm:$0xf]
    %v116 = vld [vmem:[%s1 + $0x60] sm:$0xf]
    %v117 = vld [vmem:[%s1 + $0x64] sm:$0xf]
    %v118 = vld [vmem:[%s1 + $0x68] sm:$0xf]
    %v119 = vld [vmem:[%s1 + $0x6c] sm:$0xf]
    %v120 = vld [vmem:[%s1 + $0x70] sm:$0xf]
    %v121 = vld [vmem:[%s1 + $0x74] sm:$0xf]
    %v122 = vld [vmem:[%s1 + $0x78] sm:$0xf]
    %v123 = vld [vmem:[%s1 + $0x7c] sm:$0xf]
    %v124 = vld [vmem:[%s3] sm:$0xf]
    %v157 = vunpack.c.l.b16 %v92
    %v158 = vunpack.c.l.b16 %v93
    %v159 = vunpack.c.l.b16 %v94
    %v160 = vunpack.c.l.b16 %v95
    %v161 = vunpack.c.l.b16 %v96
    %v162 = vunpack.c.l.b16 %v97
    %v163 = vunpack.c.l.b16 %v98
    %v164 = vunpack.c.l.b16 %v99
    %v165 = vunpack.c.l.b16 %v100
    %v166 = vunpack.c.l.b16 %v101
    %v167 = vunpack.c.l.b16 %v102
    %v168 = vunpack.c.l.b16 %v103
    %v169 = vunpack.c.l.b16 %v104
    %v170 = vunpack.c.l.b16 %v105
    %v171 = vunpack.c.l.b16 %v106
    %v172 = vunpack.c.l.b16 %v107
    %v173 = vunpack.c.l.b16 %v108
    %v174 = vunpack.c.l.b16 %v109
    %v175 = vunpack.c.l.b16 %v110
    %v176 = vunpack.c.l.b16 %v111
    %v177 = vunpack.c.l.b16 %v112
    %v178 = vunpack.c.l.b16 %v113
    %v179 = vunpack.c.l.b16 %v114
    %v180 = vunpack.c.l.b16 %v115
    %v181 = vunpack.c.l.b16 %v116
    %v182 = vunpack.c.l.b16 %v117
    %v183 = vunpack.c.l.b16 %v118
    %v184 = vunpack.c.l.b16 %v119
    %v185 = vunpack.c.l.b16 %v120
    %v186 = vunpack.c.l.b16 %v121
    %v187 = vunpack.c.l.b16 %v122
    %v188 = vunpack.c.l.b16 %v123
    %v189 = vpack.c.b16 %v158, %v157
    %v190 = vpack.c.b16 %v160, %v159
    %v191 = vpack.c.b16 %v162, %v161
    %v192 = vpack.c.b16 %v164, %v163
    %v193 = vpack.c.b16 %v166, %v165
    %v194 = vpack.c.b16 %v168, %v167
    %v195 = vpack.c.b16 %v170, %v169
    %v196 = vpack.c.b16 %v172, %v171
    %v197 = vpack.c.b16 %v174, %v173
    %v198 = vpack.c.b16 %v176, %v175
    %v199 = vpack.c.b16 %v178, %v177
    %v200 = vpack.c.b16 %v180, %v179
    %v201 = vpack.c.b16 %v182, %v181
    %v202 = vpack.c.b16 %v184, %v183
    %v203 = vpack.c.b16 %v186, %v185
    %v204 = vpack.c.b16 %v188, %v187
    %206 = vst [vmem:[#allocation1] ss:$4 sm:$0xff] %v124
    %v207 = vld.sshfl [vmem:[#allocation1] sm:$0xff pattern:$0x73625140]
    %v208 = vld.sshfl [vmem:[#allocation1 + $0x8] sm:$0xff pattern:$0x73625140]
    %vm209 = vcmask 31744
    %v211 = vsel %vm209, %v189, 0
    %v214 = vsel %vm209, %v190, 0
    %v217 = vsel %vm209, %v191, 0
    %v220 = vsel %vm209, %v192, 0
    %v223 = vsel %vm209, %v193, 0
    %v226 = vsel %vm209, %v194, 0
    %v229 = vsel %vm209, %v195, 0
    %v232 = vsel %vm209, %v196, 0
    %v235 = vsel %vm209, %v197, 0
    %v238 = vsel %vm209, %v198, 0
    %v241 = vsel %vm209, %v199, 0
    %v244 = vsel %vm209, %v200, 0
    %v247 = vsel %vm209, %v201, 0
    %v250 = vsel %vm209, %v202, 0
    %v253 = vsel %vm209, %v203, 0
    %v256 = vsel %vm209, %v204, 0
    %vm258 = vcmask 1041408
    %v259 = vsel %vm258, %v207, 0
    %v261 = vsel %vm258, %v208, 0
    %263 = vmatpush.bf16.msra.mxu0 0
    %264 = vmatpush.bf16.msra.mxu0 0
    %265 = vmatpush.bf16.msra.mxu0 0
    %266 = vmatpush.bf16.msra.mxu0 0
    %267 = vmatpush.bf16.msra.mxu0 0
    %268 = vmatpush.bf16.msra.mxu0 0
    %269 = vmatpush.bf16.msra.mxu0 0
    %270 = vmatpush.bf16.msra.mxu0 %v259
    %271 = vmatmul.bf16.gmra.mxu0 %v211
    %v272 = vpop.f32.mrf.mxu0
    %v273 = vadd.f32 0.0, %v272
    %v274 = vpop.f32.mrf.mxu0
    %v275 = vadd.f32 0.0, %v274
    %276 = vmatmul.bf16.gmra.mxu0 %v214
    %v277 = vpop.f32.mrf.mxu0
    %v278 = vadd.f32 0.0, %v277
    %v279 = vpop.f32.mrf.mxu0
    %v280 = vadd.f32 0.0, %v279
    %281 = vmatmul.bf16.gmra.mxu0 %v217
    %v282 = vpop.f32.mrf.mxu0
    %v283 = vadd.f32 0.0, %v282
    %v284 = vpop.f32.mrf.mxu0
    %v285 = vadd.f32 0.0, %v284
    %286 = vmatmul.bf16.gmra.mxu0 %v220
    %v287 = vpop.f32.mrf.mxu0
    %v288 = vadd.f32 0.0, %v287
    %v289 = vpop.f32.mrf.mxu0
    %v290 = vadd.f32 0.0, %v289
    %291 = vmatmul.bf16.gmra.mxu0 %v223
    %v292 = vpop.f32.mrf.mxu0
    %v293 = vadd.f32 0.0, %v292
    %v294 = vpop.f32.mrf.mxu0
    %v295 = vadd.f32 0.0, %v294
    %296 = vmatmul.bf16.gmra.mxu0 %v226
    %v297 = vpop.f32.mrf.mxu0
    %v298 = vadd.f32 0.0, %v297
    %v299 = vpop.f32.mrf.mxu0
    %v300 = vadd.f32 0.0, %v299
    %301 = vmatmul.bf16.gmra.mxu0 %v229
    %v302 = vpop.f32.mrf.mxu0
    %v303 = vadd.f32 0.0, %v302
    %v304 = vpop.f32.mrf.mxu0
    %v305 = vadd.f32 0.0, %v304
    %306 = vmatmul.bf16.gmra.mxu0 %v232
    %v307 = vpop.f32.mrf.mxu0
    %v308 = vadd.f32 0.0, %v307
    %v309 = vpop.f32.mrf.mxu0
    %v310 = vadd.f32 0.0, %v309
    %311 = vmatmul.bf16.gmra.mxu0 %v235
    %v312 = vpop.f32.mrf.mxu0
    %v313 = vadd.f32 0.0, %v312
    %v314 = vpop.f32.mrf.mxu0
    %v315 = vadd.f32 0.0, %v314
    %316 = vmatmul.bf16.gmra.mxu0 %v238
    %v317 = vpop.f32.mrf.mxu0
    %v318 = vadd.f32 0.0, %v317
    %v319 = vpop.f32.mrf.mxu0
    %v320 = vadd.f32 0.0, %v319
    %321 = vmatmul.bf16.gmra.mxu0 %v241
    %v322 = vpop.f32.mrf.mxu0
    %v323 = vadd.f32 0.0, %v322
    %v324 = vpop.f32.mrf.mxu0
    %v325 = vadd.f32 0.0, %v324
    %326 = vmatmul.bf16.gmra.mxu0 %v244
    %v327 = vpop.f32.mrf.mxu0
    %v328 = vadd.f32 0.0, %v327
    %v329 = vpop.f32.mrf.mxu0
    %v330 = vadd.f32 0.0, %v329
    %331 = vmatmul.bf16.gmra.mxu0 %v247
    %v332 = vpop.f32.mrf.mxu0
    %v333 = vadd.f32 0.0, %v332
    %v334 = vpop.f32.mrf.mxu0
    %v335 = vadd.f32 0.0, %v334
    %336 = vmatmul.bf16.gmra.mxu0 %v250
    %v337 = vpop.f32.mrf.mxu0
    %v338 = vadd.f32 0.0, %v337
    %v339 = vpop.f32.mrf.mxu0
    %v340 = vadd.f32 0.0, %v339
    %341 = vmatmul.bf16.gmra.mxu0 %v253
    %v342 = vpop.f32.mrf.mxu0
    %v343 = vadd.f32 0.0, %v342
    %v344 = vpop.f32.mrf.mxu0
    %v345 = vadd.f32 0.0, %v344
    %346 = vmatmul.bf16.gmra.mxu0 %v256
    %v347 = vpop.f32.mrf.mxu0
    %v348 = vadd.f32 0.0, %v347
    %v349 = vpop.f32.mrf.mxu0
    %v350 = vadd.f32 0.0, %v349
    %351 = vdwg.mxu0
    %352 = vmatpush.bf16.msra.mxu0 0
    %353 = vmatpush.bf16.msra.mxu0 0
    %354 = vmatpush.bf16.msra.mxu0 0
    %355 = vmatpush.bf16.msra.mxu0 0
    %356 = vmatpush.bf16.msra.mxu0 0
    %357 = vmatpush.bf16.msra.mxu0 0
    %358 = vmatpush.bf16.msra.mxu0 0
    %359 = vmatpush.bf16.msra.mxu0 %v261
    %360 = vmatmul.bf16.gmra.mxu0 %v211
    %v361 = vpop.f32.mrf.mxu0
    %v362 = vadd.f32 0.0, %v361
    %v363 = vpop.f32.mrf.mxu0
    %v364 = vadd.f32 0.0, %v363
    %365 = vmatmul.bf16.gmra.mxu0 %v214
    %v366 = vpop.f32.mrf.mxu0
    %v367 = vadd.f32 0.0, %v366
    %v368 = vpop.f32.mrf.mxu0
    %v369 = vadd.f32 0.0, %v368
    %370 = vmatmul.bf16.gmra.mxu0 %v217
    %v371 = vpop.f32.mrf.mxu0
    %v372 = vadd.f32 0.0, %v371
    %v373 = vpop.f32.mrf.mxu0
    %v374 = vadd.f32 0.0, %v373
    %375 = vmatmul.bf16.gmra.mxu0 %v220
    %v376 = vpop.f32.mrf.mxu0
    %v377 = vadd.f32 0.0, %v376
    %v378 = vpop.f32.mrf.mxu0
    %v379 = vadd.f32 0.0, %v378
    %380 = vmatmul.bf16.gmra.mxu0 %v223
    %v381 = vpop.f32.mrf.mxu0
    %v382 = vadd.f32 0.0, %v381
    %v383 = vpop.f32.mrf.mxu0
    %v384 = vadd.f32 0.0, %v383
    %385 = vmatmul.bf16.gmra.mxu0 %v226
    %v386 = vpop.f32.mrf.mxu0
    %v387 = vadd.f32 0.0, %v386
    %v388 = vpop.f32.mrf.mxu0
    %v389 = vadd.f32 0.0, %v388
    %390 = vmatmul.bf16.gmra.mxu0 %v229
    %v391 = vpop.f32.mrf.mxu0
    %v392 = vadd.f32 0.0, %v391
    %v393 = vpop.f32.mrf.mxu0
    %v394 = vadd.f32 0.0, %v393
    %395 = vmatmul.bf16.gmra.mxu0 %v232
    %v396 = vpop.f32.mrf.mxu0
    %v397 = vadd.f32 0.0, %v396
    %v398 = vpop.f32.mrf.mxu0
    %v399 = vadd.f32 0.0, %v398
    %400 = vmatmul.bf16.gmra.mxu0 %v235
    %v401 = vpop.f32.mrf.mxu0
    %v402 = vadd.f32 0.0, %v401
    %v403 = vpop.f32.mrf.mxu0
    %v404 = vadd.f32 0.0, %v403
    %405 = vmatmul.bf16.gmra.mxu0 %v238
    %v406 = vpop.f32.mrf.mxu0
    %v407 = vadd.f32 0.0, %v406
    %v408 = vpop.f32.mrf.mxu0
    %v409 = vadd.f32 0.0, %v408
    %410 = vmatmul.bf16.gmra.mxu0 %v241
    %v411 = vpop.f32.mrf.mxu0
    %v412 = vadd.f32 0.0, %v411
    %v413 = vpop.f32.mrf.mxu0
    %v414 = vadd.f32 0.0, %v413
    %415 = vmatmul.bf16.gmra.mxu0 %v244
    %v416 = vpop.f32.mrf.mxu0
    %v417 = vadd.f32 0.0, %v416
    %v418 = vpop.f32.mrf.mxu0
    %v419 = vadd.f32 0.0, %v418
    %420 = vmatmul.bf16.gmra.mxu0 %v247
    %v421 = vpop.f32.mrf.mxu0
    %v422 = vadd.f32 0.0, %v421
    %v423 = vpop.f32.mrf.mxu0
    %v424 = vadd.f32 0.0, %v423
    %425 = vmatmul.bf16.gmra.mxu0 %v250
    %v426 = vpop.f32.mrf.mxu0
    %v427 = vadd.f32 0.0, %v426
    %v428 = vpop.f32.mrf.mxu0
    %v429 = vadd.f32 0.0, %v428
    %430 = vmatmul.bf16.gmra.mxu0 %v253
    %v431 = vpop.f32.mrf.mxu0
    %v432 = vadd.f32 0.0, %v431
    %v433 = vpop.f32.mrf.mxu0
    %v434 = vadd.f32 0.0, %v433
    %435 = vmatmul.bf16.gmra.mxu0 %v256
    %v436 = vpop.f32.mrf.mxu0
    %v437 = vadd.f32 0.0, %v436
    %v438 = vpop.f32.mrf.mxu0
    %v439 = vadd.f32 0.0, %v438
    %440 = vdwg.mxu0
    %v473 = vunpack.c.l.b16 %v58
    %v474 = vunpack.c.l.b16 %v59
    %v475 = vunpack.c.l.b16 %v60
    %v476 = vunpack.c.l.b16 %v61
    %v477 = vunpack.c.l.b16 %v62
    %v478 = vunpack.c.l.b16 %v63
    %v479 = vunpack.c.l.b16 %v64
    %v480 = vunpack.c.l.b16 %v65
    %v481 = vunpack.c.l.b16 %v66
    %v482 = vunpack.c.l.b16 %v67
    %v483 = vunpack.c.l.b16 %v68
    %v484 = vunpack.c.l.b16 %v69
    %v485 = vunpack.c.l.b16 %v70
    %v486 = vunpack.c.l.b16 %v71
    %v487 = vunpack.c.l.b16 %v72
    %v488 = vunpack.c.l.b16 %v73
    %v489 = vunpack.c.l.b16 %v74
    %v490 = vunpack.c.l.b16 %v75
    %v491 = vunpack.c.l.b16 %v76
    %v492 = vunpack.c.l.b16 %v77
    %v493 = vunpack.c.l.b16 %v78
    %v494 = vunpack.c.l.b16 %v79
    %v495 = vunpack.c.l.b16 %v80
    %v496 = vunpack.c.l.b16 %v81
    %v497 = vunpack.c.l.b16 %v82
    %v498 = vunpack.c.l.b16 %v83
    %v499 = vunpack.c.l.b16 %v84
    %v500 = vunpack.c.l.b16 %v85
    %v501 = vunpack.c.l.b16 %v86
    %v502 = vunpack.c.l.b16 %v87
    %v503 = vunpack.c.l.b16 %v88
    %v504 = vunpack.c.l.b16 %v89
    %v505 = vpack.c.b16 %v474, %v473
    %v506 = vpack.c.b16 %v476, %v475
    %v507 = vpack.c.b16 %v478, %v477
    %v508 = vpack.c.b16 %v480, %v479
    %v509 = vpack.c.b16 %v482, %v481
    %v510 = vpack.c.b16 %v484, %v483
    %v511 = vpack.c.b16 %v486, %v485
    %v512 = vpack.c.b16 %v488, %v487
    %v513 = vpack.c.b16 %v490, %v489
    %v514 = vpack.c.b16 %v492, %v491
    %v515 = vpack.c.b16 %v494, %v493
    %v516 = vpack.c.b16 %v496, %v495
    %v517 = vpack.c.b16 %v498, %v497
    %v518 = vpack.c.b16 %v500, %v499
    %v519 = vpack.c.b16 %v502, %v501
    %v520 = vpack.c.b16 %v504, %v503
    %v523 = vunpack.c.l.b16 %v90
    %v524 = vunpack.c.h.b16 %v90
    %v525 = vunpack.c.l.b16 %v91
    %v526 = vunpack.c.h.b16 %v91
    %v527 = vpack.c.b16 %v525, %v523
    %v528 = vpack.c.b16 %v526, %v524
    %vm529 = vcmask 105472
    %v531 = vsel %vm529, %v505, 0
    %v534 = vsel %vm529, %v506, 0
    %v537 = vsel %vm529, %v507, 0
    %v540 = vsel %vm529, %v508, 0
    %v543 = vsel %vm529, %v509, 0
    %v546 = vsel %vm529, %v510, 0
    %v549 = vsel %vm529, %v511, 0
    %v552 = vsel %vm529, %v512, 0
    %v555 = vsel %vm529, %v513, 0
    %v558 = vsel %vm529, %v514, 0
    %v561 = vsel %vm529, %v515, 0
    %v564 = vsel %vm529, %v516, 0
    %v567 = vsel %vm529, %v517, 0
    %v570 = vsel %vm529, %v518, 0
    %v573 = vsel %vm529, %v519, 0
    %v576 = vsel %vm529, %v520, 0
    %vm578 = vcmask 1045504
    %vm579 = vcmask 1046528
    %v580 = vsel %vm578, 4294967295, 65535
    %v581 = vsel %vm579, %v580, 0
    %v583 = vand.u32 %v527, %v581
    %v586 = vand.u32 %v528, %v581
    %588 = vmatpush.bf16.msra.mxu0 0
    %589 = vmatpush.bf16.msra.mxu0 0
    %590 = vmatpush.bf16.msra.mxu0 0
    %591 = vmatpush.bf16.msra.mxu0 0
    %592 = vmatpush.bf16.msra.mxu0 0
    %593 = vmatpush.bf16.msra.mxu0 0
    %594 = vmatpush.bf16.msra.mxu0 0
    %595 = vmatpush.bf16.msra.mxu0 %v583
    %596 = vmatmul.bf16.gmra.mxu0 %v531
    %v597 = vpop.f32.mrf.mxu0
    %v598 = vadd.f32 %v273, %v597
    %v599 = vpop.f32.mrf.mxu0
    %v600 = vadd.f32 %v275, %v599
    %601 = vmatmul.bf16.gmra.mxu0 %v534
    %v602 = vpop.f32.mrf.mxu0
    %v603 = vadd.f32 %v278, %v602
    %v604 = vpop.f32.mrf.mxu0
    %v605 = vadd.f32 %v280, %v604
    %606 = vmatmul.bf16.gmra.mxu0 %v537
    %v607 = vpop.f32.mrf.mxu0
    %v608 = vadd.f32 %v283, %v607
    %v609 = vpop.f32.mrf.mxu0
    %v610 = vadd.f32 %v285, %v609
    %611 = vmatmul.bf16.gmra.mxu0 %v540
    %v612 = vpop.f32.mrf.mxu0
    %v613 = vadd.f32 %v288, %v612
    %v614 = vpop.f32.mrf.mxu0
    %v615 = vadd.f32 %v290, %v614
    %616 = vmatmul.bf16.gmra.mxu0 %v543
    %v617 = vpop.f32.mrf.mxu0
    %v618 = vadd.f32 %v293, %v617
    %v619 = vpop.f32.mrf.mxu0
    %v620 = vadd.f32 %v295, %v619
    %621 = vmatmul.bf16.gmra.mxu0 %v546
    %v622 = vpop.f32.mrf.mxu0
    %v623 = vadd.f32 %v298, %v622
    %v624 = vpop.f32.mrf.mxu0
    %v625 = vadd.f32 %v300, %v624
    %626 = vmatmul.bf16.gmra.mxu0 %v549
    %v627 = vpop.f32.mrf.mxu0
    %v628 = vadd.f32 %v303, %v627
    %v629 = vpop.f32.mrf.mxu0
    %v630 = vadd.f32 %v305, %v629
    %631 = vmatmul.bf16.gmra.mxu0 %v552
    %v632 = vpop.f32.mrf.mxu0
    %v633 = vadd.f32 %v308, %v632
    %v634 = vpop.f32.mrf.mxu0
    %v635 = vadd.f32 %v310, %v634
    %636 = vmatmul.bf16.gmra.mxu0 %v555
    %v637 = vpop.f32.mrf.mxu0
    %v638 = vadd.f32 %v313, %v637
    %v639 = vpop.f32.mrf.mxu0
    %v640 = vadd.f32 %v315, %v639
    %641 = vmatmul.bf16.gmra.mxu0 %v558
    %v642 = vpop.f32.mrf.mxu0
    %v643 = vadd.f32 %v318, %v642
    %v644 = vpop.f32.mrf.mxu0
    %v645 = vadd.f32 %v320, %v644
    %646 = vmatmul.bf16.gmra.mxu0 %v561
    %v647 = vpop.f32.mrf.mxu0
    %v648 = vadd.f32 %v323, %v647
    %v649 = vpop.f32.mrf.mxu0
    %v650 = vadd.f32 %v325, %v649
    %651 = vmatmul.bf16.gmra.mxu0 %v564
    %v652 = vpop.f32.mrf.mxu0
    %v653 = vadd.f32 %v328, %v652
    %v654 = vpop.f32.mrf.mxu0
    %v655 = vadd.f32 %v330, %v654
    %656 = vmatmul.bf16.gmra.mxu0 %v567
    %v657 = vpop.f32.mrf.mxu0
    %v658 = vadd.f32 %v333, %v657
    %v659 = vpop.f32.mrf.mxu0
    %v660 = vadd.f32 %v335, %v659
    %661 = vmatmul.bf16.gmra.mxu0 %v570
    %v662 = vpop.f32.mrf.mxu0
    %v663 = vadd.f32 %v338, %v662
    %v664 = vpop.f32.mrf.mxu0
    %v665 = vadd.f32 %v340, %v664
    %666 = vmatmul.bf16.gmra.mxu0 %v573
    %v667 = vpop.f32.mrf.mxu0
    %v668 = vadd.f32 %v343, %v667
    %v669 = vpop.f32.mrf.mxu0
    %v670 = vadd.f32 %v345, %v669
    %671 = vmatmul.bf16.gmra.mxu0 %v576
    %v672 = vpop.f32.mrf.mxu0
    %v673 = vadd.f32 %v348, %v672
    %v674 = vpop.f32.mrf.mxu0
    %v675 = vadd.f32 %v350, %v674
    %676 = vdwg.mxu0
    %677 = vmatpush.bf16.msra.mxu0 0
    %678 = vmatpush.bf16.msra.mxu0 0
    %679 = vmatpush.bf16.msra.mxu0 0
    %680 = vmatpush.bf16.msra.mxu0 0
    %681 = vmatpush.bf16.msra.mxu0 0
    %682 = vmatpush.bf16.msra.mxu0 0
    %683 = vmatpush.bf16.msra.mxu0 0
    %684 = vmatpush.bf16.msra.mxu0 %v586
    %685 = vmatmul.bf16.gmra.mxu0 %v531
    %v686 = vpop.f32.mrf.mxu0
    %v687 = vadd.f32 %v362, %v686
    %v688 = vpop.f32.mrf.mxu0
    %v689 = vadd.f32 %v364, %v688
    %690 = vmatmul.bf16.gmra.mxu0 %v534
    %v691 = vpop.f32.mrf.mxu0
    %v692 = vadd.f32 %v367, %v691
    %v693 = vpop.f32.mrf.mxu0
    %v694 = vadd.f32 %v369, %v693
    %695 = vmatmul.bf16.gmra.mxu0 %v537
    %v696 = vpop.f32.mrf.mxu0
    %v697 = vadd.f32 %v372, %v696
    %v698 = vpop.f32.mrf.mxu0
    %v699 = vadd.f32 %v374, %v698
    %700 = vmatmul.bf16.gmra.mxu0 %v540
    %v701 = vpop.f32.mrf.mxu0
    %v702 = vadd.f32 %v377, %v701
    %v703 = vpop.f32.mrf.mxu0
    %v704 = vadd.f32 %v379, %v703
    %705 = vmatmul.bf16.gmra.mxu0 %v543
    %v706 = vpop.f32.mrf.mxu0
    %v707 = vadd.f32 %v382, %v706
    %v708 = vpop.f32.mrf.mxu0
    %v709 = vadd.f32 %v384, %v708
    %710 = vmatmul.bf16.gmra.mxu0 %v546
    %v711 = vpop.f32.mrf.mxu0
    %v712 = vadd.f32 %v387, %v711
    %v713 = vpop.f32.mrf.mxu0
    %v714 = vadd.f32 %v389, %v713
    %715 = vmatmul.bf16.gmra.mxu0 %v549
    %v716 = vpop.f32.mrf.mxu0
    %v717 = vadd.f32 %v392, %v716
    %v718 = vpop.f32.mrf.mxu0
    %v719 = vadd.f32 %v394, %v718
    %720 = vmatmul.bf16.gmra.mxu0 %v552
    %v721 = vpop.f32.mrf.mxu0
    %v722 = vadd.f32 %v397, %v721
    %v723 = vpop.f32.mrf.mxu0
    %v724 = vadd.f32 %v399, %v723
    %725 = vmatmul.bf16.gmra.mxu0 %v555
    %v726 = vpop.f32.mrf.mxu0
    %v727 = vadd.f32 %v402, %v726
    %v728 = vpop.f32.mrf.mxu0
    %v729 = vadd.f32 %v404, %v728
    %730 = vmatmul.bf16.gmra.mxu0 %v558
    %v731 = vpop.f32.mrf.mxu0
    %v732 = vadd.f32 %v407, %v731
    %v733 = vpop.f32.mrf.mxu0
    %v734 = vadd.f32 %v409, %v733
    %735 = vmatmul.bf16.gmra.mxu0 %v561
    %v736 = vpop.f32.mrf.mxu0
    %v737 = vadd.f32 %v412, %v736
    %v738 = vpop.f32.mrf.mxu0
    %v739 = vadd.f32 %v414, %v738
    %740 = vmatmul.bf16.gmra.mxu0 %v564
    %v741 = vpop.f32.mrf.mxu0
    %v742 = vadd.f32 %v417, %v741
    %v743 = vpop.f32.mrf.mxu0
    %v744 = vadd.f32 %v419, %v743
    %745 = vmatmul.bf16.gmra.mxu0 %v567
    %v746 = vpop.f32.mrf.mxu0
    %v747 = vadd.f32 %v422, %v746
    %v748 = vpop.f32.mrf.mxu0
    %v749 = vadd.f32 %v424, %v748
    %750 = vmatmul.bf16.gmra.mxu0 %v570
    %v751 = vpop.f32.mrf.mxu0
    %v752 = vadd.f32 %v427, %v751
    %v753 = vpop.f32.mrf.mxu0
    %v754 = vadd.f32 %v429, %v753
    %755 = vmatmul.bf16.gmra.mxu0 %v573
    %v756 = vpop.f32.mrf.mxu0
    %v757 = vadd.f32 %v432, %v756
    %v758 = vpop.f32.mrf.mxu0
    %v759 = vadd.f32 %v434, %v758
    %760 = vmatmul.bf16.gmra.mxu0 %v576
    %v761 = vpop.f32.mrf.mxu0
    %v762 = vadd.f32 %v437, %v761
    %v763 = vpop.f32.mrf.mxu0
    %v764 = vadd.f32 %v439, %v763
    %765 = vdwg.mxu0
    %v766 = vld [vmem:[%s4] sm:$0x3]
    %v768 = vperm.slane %v766, 0
    %v769 = vperm.slane %v766, 1
    %v772 = vadd.f32 %v598, %v768
    %v773 = vadd.f32 %v687, %v769
    %v774 = vadd.f32 %v600, %v768
    %v775 = vadd.f32 %v689, %v769
    %v776 = vadd.f32 %v603, %v768
    %v777 = vadd.f32 %v692, %v769
    %v778 = vadd.f32 %v605, %v768
    %v779 = vadd.f32 %v694, %v769
    %v780 = vadd.f32 %v608, %v768
    %v781 = vadd.f32 %v697, %v769
    %v782 = vadd.f32 %v610, %v768
    %v783 = vadd.f32 %v699, %v769
    %v784 = vadd.f32 %v613, %v768
    %v785 = vadd.f32 %v702, %v769
    %v786 = vadd.f32 %v615, %v768
    %v787 = vadd.f32 %v704, %v769
    %v788 = vadd.f32 %v618, %v768
    %v789 = vadd.f32 %v707, %v769
    %v790 = vadd.f32 %v620, %v768
    %v791 = vadd.f32 %v709, %v769
    %v792 = vadd.f32 %v623, %v768
    %v793 = vadd.f32 %v712, %v769
    %v794 = vadd.f32 %v625, %v768
    %v795 = vadd.f32 %v714, %v769
    %v796 = vadd.f32 %v628, %v768
    %v797 = vadd.f32 %v717, %v769
    %v798 = vadd.f32 %v630, %v768
    %v799 = vadd.f32 %v719, %v769
    %v800 = vadd.f32 %v633, %v768
    %v801 = vadd.f32 %v722, %v769
    %v802 = vadd.f32 %v635, %v768
    %v803 = vadd.f32 %v724, %v769
    %v804 = vadd.f32 %v638, %v768
    %v805 = vadd.f32 %v727, %v769
    %v806 = vadd.f32 %v640, %v768
    %v807 = vadd.f32 %v729, %v769
    %v808 = vadd.f32 %v643, %v768
    %v809 = vadd.f32 %v732, %v769
    %v810 = vadd.f32 %v645, %v768
    %v811 = vadd.f32 %v734, %v769
    %v812 = vadd.f32 %v648, %v768
    %v813 = vadd.f32 %v737, %v769
    %v814 = vadd.f32 %v650, %v768
    %v815 = vadd.f32 %v739, %v769
    %v816 = vadd.f32 %v653, %v768
    %v817 = vadd.f32 %v742, %v769
    %v818 = vadd.f32 %v655, %v768
    %v819 = vadd.f32 %v744, %v769
    %v820 = vadd.f32 %v658, %v768
    %v821 = vadd.f32 %v747, %v769
    %v822 = vadd.f32 %v660, %v768
    %v823 = vadd.f32 %v749, %v769
    %v824 = vadd.f32 %v663, %v768
    %v825 = vadd.f32 %v752, %v769
    %v826 = vadd.f32 %v665, %v768
    %v827 = vadd.f32 %v754, %v769
    %v828 = vadd.f32 %v668, %v768
    %v829 = vadd.f32 %v757, %v769
    %v830 = vadd.f32 %v670, %v768
    %v831 = vadd.f32 %v759, %v769
    %v832 = vadd.f32 %v673, %v768
    %v833 = vadd.f32 %v762, %v769
    %v834 = vadd.f32 %v675, %v768
    %v835 = vadd.f32 %v764, %v769
    %v836 = vpack.c.bf16 %v773, %v772
    %v837 = vpack.c.bf16 %v775, %v774
    %v838 = vpack.c.bf16 %v777, %v776
    %v839 = vpack.c.bf16 %v779, %v778
    %v840 = vpack.c.bf16 %v781, %v780
    %v841 = vpack.c.bf16 %v783, %v782
    %v842 = vpack.c.bf16 %v785, %v784
    %v843 = vpack.c.bf16 %v787, %v786
    %v844 = vpack.c.bf16 %v789, %v788
    %v845 = vpack.c.bf16 %v791, %v790
    %v846 = vpack.c.bf16 %v793, %v792
    %v847 = vpack.c.bf16 %v795, %v794
    %v848 = vpack.c.bf16 %v797, %v796
    %v849 = vpack.c.bf16 %v799, %v798
    %v850 = vpack.c.bf16 %v801, %v800
    %v851 = vpack.c.bf16 %v803, %v802
    %v852 = vpack.c.bf16 %v805, %v804
    %v853 = vpack.c.bf16 %v807, %v806
    %v854 = vpack.c.bf16 %v809, %v808
    %v855 = vpack.c.bf16 %v811, %v810
    %v856 = vpack.c.bf16 %v813, %v812
    %v857 = vpack.c.bf16 %v815, %v814
    %v858 = vpack.c.bf16 %v817, %v816
    %v859 = vpack.c.bf16 %v819, %v818
    %v860 = vpack.c.bf16 %v821, %v820
    %v861 = vpack.c.bf16 %v823, %v822
    %v862 = vpack.c.bf16 %v825, %v824
    %v863 = vpack.c.bf16 %v827, %v826
    %v864 = vpack.c.bf16 %v829, %v828
    %v865 = vpack.c.bf16 %v831, %v830
    %v866 = vpack.c.bf16 %v833, %v832
    %v867 = vpack.c.bf16 %v835, %v834
    %v868 = vunpack.c.l.bf16 %v836
    %v869 = vunpack.c.h.bf16 %v836
    %v870 = vunpack.c.l.bf16 %v837
    %v871 = vunpack.c.h.bf16 %v837
    %v872 = vunpack.c.l.bf16 %v838
    %v873 = vunpack.c.h.bf16 %v838
    %v874 = vunpack.c.l.bf16 %v839
    %v875 = vunpack.c.h.bf16 %v839
    %v876 = vunpack.c.l.bf16 %v840
    %v877 = vunpack.c.h.bf16 %v840
    %v878 = vunpack.c.l.bf16 %v841
    %v879 = vunpack.c.h.bf16 %v841
    %v880 = vunpack.c.l.bf16 %v842
    %v881 = vunpack.c.h.bf16 %v842
    %v882 = vunpack.c.l.bf16 %v843
    %v883 = vunpack.c.h.bf16 %v843
    %v884 = vunpack.c.l.bf16 %v844
    %v885 = vunpack.c.h.bf16 %v844
    %v886 = vunpack.c.l.bf16 %v845
    %v887 = vunpack.c.h.bf16 %v845
    %v888 = vunpack.c.l.bf16 %v846
    %v889 = vunpack.c.h.bf16 %v846
    %v890 = vunpack.c.l.bf16 %v847
    %v891 = vunpack.c.h.bf16 %v847
    %v892 = vunpack.c.l.bf16 %v848
    %v893 = vunpack.c.h.bf16 %v848
    %v894 = vunpack.c.l.bf16 %v849
    %v895 = vunpack.c.h.bf16 %v849
    %v896 = vunpack.c.l.bf16 %v850
    %v897 = vunpack.c.h.bf16 %v850
    %v898 = vunpack.c.l.bf16 %v851
    %v899 = vunpack.c.h.bf16 %v851
    %v900 = vunpack.c.l.bf16 %v852
    %v901 = vunpack.c.h.bf16 %v852
    %v902 = vunpack.c.l.bf16 %v853
    %v903 = vunpack.c.h.bf16 %v853
    %v904 = vunpack.c.l.bf16 %v854
    %v905 = vunpack.c.h.bf16 %v854
    %v906 = vunpack.c.l.bf16 %v855
    %v907 = vunpack.c.h.bf16 %v855
    %v908 = vunpack.c.l.bf16 %v856
    %v909 = vunpack.c.h.bf16 %v856
    %v910 = vunpack.c.l.bf16 %v857
    %v911 = vunpack.c.h.bf16 %v857
    %v912 = vunpack.c.l.bf16 %v858
    %v913 = vunpack.c.h.bf16 %v858
    %v914 = vunpack.c.l.bf16 %v859
    %v915 = vunpack.c.h.bf16 %v859
    %v916 = vunpack.c.l.bf16 %v860
    %v917 = vunpack.c.h.bf16 %v860
    %v918 = vunpack.c.l.bf16 %v861
    %v919 = vunpack.c.h.bf16 %v861
    %v920 = vunpack.c.l.bf16 %v862
    %v921 = vunpack.c.h.bf16 %v862
    %v922 = vunpack.c.l.bf16 %v863
    %v923 = vunpack.c.h.bf16 %v863
    %v924 = vunpack.c.l.bf16 %v864
    %v925 = vunpack.c.h.bf16 %v864
    %v926 = vunpack.c.l.bf16 %v865
    %v927 = vunpack.c.h.bf16 %v865
    %v928 = vunpack.c.l.bf16 %v866
    %v929 = vunpack.c.h.bf16 %v866
    %v930 = vunpack.c.l.bf16 %v867
    %v931 = vunpack.c.h.bf16 %v867
    %v932 = vmax.f32 %v868, 0.0
    %v933 = vmax.f32 %v869, 0.0
    %v934 = vmax.f32 %v870, 0.0
    %v935 = vmax.f32 %v871, 0.0
    %v936 = vmax.f32 %v872, 0.0
    %v937 = vmax.f32 %v873, 0.0
    %v938 = vmax.f32 %v874, 0.0
    %v939 = vmax.f32 %v875, 0.0
    %v940 = vmax.f32 %v876, 0.0
    %v941 = vmax.f32 %v877, 0.0
    %v942 = vmax.f32 %v878, 0.0
    %v943 = vmax.f32 %v879, 0.0
    %v944 = vmax.f32 %v880, 0.0
    %v945 = vmax.f32 %v881, 0.0
    %v946 = vmax.f32 %v882, 0.0
    %v947 = vmax.f32 %v883, 0.0
    %v948 = vmax.f32 %v884, 0.0
    %v949 = vmax.f32 %v885, 0.0
    %v950 = vmax.f32 %v886, 0.0
    %v951 = vmax.f32 %v887, 0.0
    %v952 = vmax.f32 %v888, 0.0
    %v953 = vmax.f32 %v889, 0.0
    %v954 = vmax.f32 %v890, 0.0
    %v955 = vmax.f32 %v891, 0.0
    %v956 = vmax.f32 %v892, 0.0
    %v957 = vmax.f32 %v893, 0.0
    %v958 = vmax.f32 %v894, 0.0
    %v959 = vmax.f32 %v895, 0.0
    %v960 = vmax.f32 %v896, 0.0
    %v961 = vmax.f32 %v897, 0.0
    %v962 = vmax.f32 %v898, 0.0
    %v963 = vmax.f32 %v899, 0.0
    %v964 = vmax.f32 %v900, 0.0
    %v965 = vmax.f32 %v901, 0.0
    %v966 = vmax.f32 %v902, 0.0
    %v967 = vmax.f32 %v903, 0.0
    %v968 = vmax.f32 %v904, 0.0
    %v969 = vmax.f32 %v905, 0.0
    %v970 = vmax.f32 %v906, 0.0
    %v971 = vmax.f32 %v907, 0.0
    %v972 = vmax.f32 %v908, 0.0
    %v973 = vmax.f32 %v909, 0.0
    %v974 = vmax.f32 %v910, 0.0
    %v975 = vmax.f32 %v911, 0.0
    %v976 = vmax.f32 %v912, 0.0
    %v977 = vmax.f32 %v913, 0.0
    %v978 = vmax.f32 %v914, 0.0
    %v979 = vmax.f32 %v915, 0.0
    %v980 = vmax.f32 %v916, 0.0
    %v981 = vmax.f32 %v917, 0.0
    %v982 = vmax.f32 %v918, 0.0
    %v983 = vmax.f32 %v919, 0.0
    %v984 = vmax.f32 %v920, 0.0
    %v985 = vmax.f32 %v921, 0.0
    %v986 = vmax.f32 %v922, 0.0
    %v987 = vmax.f32 %v923, 0.0
    %v988 = vmax.f32 %v924, 0.0
    %v989 = vmax.f32 %v925, 0.0
    %v990 = vmax.f32 %v926, 0.0
    %v991 = vmax.f32 %v927, 0.0
    %v992 = vmax.f32 %v928, 0.0
    %v993 = vmax.f32 %v929, 0.0
    %v994 = vmax.f32 %v930, 0.0
    %v995 = vmax.f32 %v931, 0.0
    %v996 = vpack.c.bf16 %v934, %v932
    %v997 = vpack.c.bf16 %v935, %v933
    %v998 = vpack.c.bf16 %v938, %v936
    %v999 = vpack.c.bf16 %v939, %v937
    %v1000 = vpack.c.bf16 %v942, %v940
    %v1001 = vpack.c.bf16 %v943, %v941
    %v1002 = vpack.c.bf16 %v946, %v944
    %v1003 = vpack.c.bf16 %v947, %v945
    %v1004 = vpack.c.bf16 %v950, %v948
    %v1005 = vpack.c.bf16 %v951, %v949
    %v1006 = vpack.c.bf16 %v954, %v952
    %v1007 = vpack.c.bf16 %v955, %v953
    %v1008 = vpack.c.bf16 %v958, %v956
    %v1009 = vpack.c.bf16 %v959, %v957
    %v1010 = vpack.c.bf16 %v962, %v960
    %v1011 = vpack.c.bf16 %v963, %v961
    %v1012 = vpack.c.bf16 %v966, %v964
    %v1013 = vpack.c.bf16 %v967, %v965
    %v1014 = vpack.c.bf16 %v970, %v968
    %v1015 = vpack.c.bf16 %v971, %v969
    %v1016 = vpack.c.bf16 %v974, %v972
    %v1017 = vpack.c.bf16 %v975, %v973
    %v1018 = vpack.c.bf16 %v978, %v976
    %v1019 = vpack.c.bf16 %v979, %v977
    %v1020 = vpack.c.bf16 %v982, %v980
    %v1021 = vpack.c.bf16 %v983, %v981
    %v1022 = vpack.c.bf16 %v986, %v984
    %v1023 = vpack.c.bf16 %v987, %v985
    %v1024 = vpack.c.bf16 %v990, %v988
    %v1025 = vpack.c.bf16 %v991, %v989
    %v1026 = vpack.c.bf16 %v994, %v992
    %v1027 = vpack.c.bf16 %v995, %v993
    %v1028 = vld [vmem:[%s5] sm:$0xff]
    %v1029 = vld [vmem:[%s5 + $0x8] sm:$0xff]
    %v1030 = vld [vmem:[%s5 + $0x10] sm:$0xff]
    %v1031 = vld [vmem:[%s5 + $0x18] sm:$0xff]
    %v1032 = vld [vmem:[%s5 + $0x20] sm:$0xff]
    %v1033 = vld [vmem:[%s5 + $0x28] sm:$0xff]
    %v1034 = vld [vmem:[%s5 + $0x30] sm:$0xff]
    %v1035 = vld [vmem:[%s5 + $0x38] sm:$0xff]
    %v1036 = vld [vmem:[%s5 + $0x40] sm:$0xff]
    %v1037 = vld [vmem:[%s5 + $0x48] sm:$0xff]
    %v1038 = vld [vmem:[%s5 + $0x50] sm:$0xff]
    %v1039 = vld [vmem:[%s5 + $0x58] sm:$0xff]
    %v1040 = vld [vmem:[%s5 + $0x60] sm:$0xff]
    %v1041 = vld [vmem:[%s5 + $0x68] sm:$0xff]
    %v1042 = vld [vmem:[%s5 + $0x70] sm:$0xff]
    %v1043 = vld [vmem:[%s5 + $0x78] sm:$0xff]
    %v1044 = vld [vmem:[%s5 + $0x80] sm:$0xff]
    %v1045 = vld [vmem:[%s5 + $0x88] sm:$0xff]
    %v1046 = vld [vmem:[%s5 + $0x90] sm:$0xff]
    %v1047 = vld [vmem:[%s5 + $0x98] sm:$0xff]
    %v1048 = vld [vmem:[%s5 + $0xa0] sm:$0xff]
    %v1049 = vld [vmem:[%s5 + $0xa8] sm:$0xff]
    %v1050 = vld [vmem:[%s5 + $0xb0] sm:$0xff]
    %v1051 = vld [vmem:[%s5 + $0xb8] sm:$0xff]
    %v1052 = vld [vmem:[%s5 + $0xc0] sm:$0xff]
    %v1053 = vld [vmem:[%s5 + $0xc8] sm:$0xff]
    %v1054 = vld [vmem:[%s5 + $0xd0] sm:$0xff]
    %v1055 = vld [vmem:[%s5 + $0xd8] sm:$0xff]
    %v1056 = vld [vmem:[%s5 + $0xe0] sm:$0xff]
    %v1057 = vld [vmem:[%s5 + $0xe8] sm:$0xff]
    %v1058 = vld [vmem:[%s5 + $0xf0] sm:$0xff]
    %v1059 = vld [vmem:[%s5 + $0xf8] sm:$0xff]
    %v1060 = vld [vmem:[%s6] sm:$0x3]
    %v1062 = vperm.slane %v1060, 0
    %v1063 = vperm.slane %v1060, 1
    %v1098 = vunpack.c.l.b16 %v1028
    %v1099 = vunpack.c.h.b16 %v1028
    %v1100 = vunpack.c.l.b16 %v1029
    %v1101 = vunpack.c.h.b16 %v1029
    %v1102 = vunpack.c.l.b16 %v1030
    %v1103 = vunpack.c.h.b16 %v1030
    %v1104 = vunpack.c.l.b16 %v1031
    %v1105 = vunpack.c.h.b16 %v1031
    %v1106 = vunpack.c.l.b16 %v1032
    %v1107 = vunpack.c.h.b16 %v1032
    %v1108 = vunpack.c.l.b16 %v1033
    %v1109 = vunpack.c.h.b16 %v1033
    %v1110 = vunpack.c.l.b16 %v1034
    %v1111 = vunpack.c.h.b16 %v1034
    %v1112 = vunpack.c.l.b16 %v1035
    %v1113 = vunpack.c.h.b16 %v1035
    %v1114 = vunpack.c.l.b16 %v1036
    %v1115 = vunpack.c.h.b16 %v1036
    %v1116 = vunpack.c.l.b16 %v1037
    %v1117 = vunpack.c.h.b16 %v1037
    %v1118 = vunpack.c.l.b16 %v1038
    %v1119 = vunpack.c.h.b16 %v1038
    %v1120 = vunpack.c.l.b16 %v1039
    %v1121 = vunpack.c.h.b16 %v1039
    %v1122 = vunpack.c.l.b16 %v1040
    %v1123 = vunpack.c.h.b16 %v1040
    %v1124 = vunpack.c.l.b16 %v1041
    %v1125 = vunpack.c.h.b16 %v1041
    %v1126 = vunpack.c.l.b16 %v1042
    %v1127 = vunpack.c.h.b16 %v1042
    %v1128 = vunpack.c.l.b16 %v1043
    %v1129 = vunpack.c.h.b16 %v1043
    %v1130 = vunpack.c.l.b16 %v1044
    %v1131 = vunpack.c.h.b16 %v1044
    %v1132 = vunpack.c.l.b16 %v1045
    %v1133 = vunpack.c.h.b16 %v1045
    %v1134 = vunpack.c.l.b16 %v1046
    %v1135 = vunpack.c.h.b16 %v1046
    %v1136 = vunpack.c.l.b16 %v1047
    %v1137 = vunpack.c.h.b16 %v1047
    %v1138 = vunpack.c.l.b16 %v1048
    %v1139 = vunpack.c.h.b16 %v1048
    %v1140 = vunpack.c.l.b16 %v1049
    %v1141 = vunpack.c.h.b16 %v1049
    %v1142 = vunpack.c.l.b16 %v1050
    %v1143 = vunpack.c.h.b16 %v1050
    %v1144 = vunpack.c.l.b16 %v1051
    %v1145 = vunpack.c.h.b16 %v1051
    %v1146 = vunpack.c.l.b16 %v1052
    %v1147 = vunpack.c.h.b16 %v1052
    %v1148 = vunpack.c.l.b16 %v1053
    %v1149 = vunpack.c.h.b16 %v1053
    %v1150 = vunpack.c.l.b16 %v1054
    %v1151 = vunpack.c.h.b16 %v1054
    %v1152 = vunpack.c.l.b16 %v1055
    %v1153 = vunpack.c.h.b16 %v1055
    %v1154 = vunpack.c.l.b16 %v1056
    %v1155 = vunpack.c.h.b16 %v1056
    %v1156 = vunpack.c.l.b16 %v1057
    %v1157 = vunpack.c.h.b16 %v1057
    %v1158 = vunpack.c.l.b16 %v1058
    %v1159 = vunpack.c.h.b16 %v1058
    %v1160 = vunpack.c.l.b16 %v1059
    %v1161 = vunpack.c.h.b16 %v1059
    %v1162 = vpack.c.b16 %v1100, %v1098
    %v1163 = vpack.c.b16 %v1101, %v1099
    %v1164 = vpack.c.b16 %v1104, %v1102
    %v1165 = vpack.c.b16 %v1105, %v1103
    %v1166 = vpack.c.b16 %v1108, %v1106
    %v1167 = vpack.c.b16 %v1109, %v1107
    %v1168 = vpack.c.b16 %v1112, %v1110
    %v1169 = vpack.c.b16 %v1113, %v1111
    %v1170 = vpack.c.b16 %v1116, %v1114
    %v1171 = vpack.c.b16 %v1117, %v1115
    %v1172 = vpack.c.b16 %v1120, %v1118
    %v1173 = vpack.c.b16 %v1121, %v1119
    %v1174 = vpack.c.b16 %v1124, %v1122
    %v1175 = vpack.c.b16 %v1125, %v1123
    %v1176 = vpack.c.b16 %v1128, %v1126
    %v1177 = vpack.c.b16 %v1129, %v1127
    %v1178 = vpack.c.b16 %v1132, %v1130
    %v1179 = vpack.c.b16 %v1133, %v1131
    %v1180 = vpack.c.b16 %v1136, %v1134
    %v1181 = vpack.c.b16 %v1137, %v1135
    %v1182 = vpack.c.b16 %v1140, %v1138
    %v1183 = vpack.c.b16 %v1141, %v1139
    %v1184 = vpack.c.b16 %v1144, %v1142
    %v1185 = vpack.c.b16 %v1145, %v1143
    %v1186 = vpack.c.b16 %v1148, %v1146
    %v1187 = vpack.c.b16 %v1149, %v1147
    %v1188 = vpack.c.b16 %v1152, %v1150
    %v1189 = vpack.c.b16 %v1153, %v1151
    %v1190 = vpack.c.b16 %v1156, %v1154
    %v1191 = vpack.c.b16 %v1157, %v1155
    %v1192 = vpack.c.b16 %v1160, %v1158
    %v1193 = vpack.c.b16 %v1161, %v1159
    %1226 = vmatpush.bf16.msra.mxu0 %v1176
    %1227 = vmatpush.bf16.msra.mxu0 %v1174
    %1228 = vmatpush.bf16.msra.mxu0 %v1172
    %1229 = vmatpush.bf16.msra.mxu0 %v1170
    %1230 = vmatpush.bf16.msra.mxu0 %v1168
    %1231 = vmatpush.bf16.msra.mxu0 %v1166
    %1232 = vmatpush.bf16.msra.mxu0 %v1164
    %1233 = vmatpush.bf16.msra.mxu0 %v1162
    %1234 = vmatmul.bf16.gmra.mxu0 %v996
    %v1235 = vpop.f32.mrf.mxu0
    %v1236 = vadd.f32 %v1062, %v1235
    %v1237 = vpop.f32.mrf.mxu0
    %v1238 = vadd.f32 %v1062, %v1237
    %1239 = vmatmul.bf16.gmra.mxu0 %v998
    %v1240 = vpop.f32.mrf.mxu0
    %v1241 = vadd.f32 %v1062, %v1240
    %v1242 = vpop.f32.mrf.mxu0
    %v1243 = vadd.f32 %v1062, %v1242
    %1244 = vmatmul.bf16.gmra.mxu0 %v1000
    %v1245 = vpop.f32.mrf.mxu0
    %v1246 = vadd.f32 %v1062, %v1245
    %v1247 = vpop.f32.mrf.mxu0
    %v1248 = vadd.f32 %v1062, %v1247
    %1249 = vmatmul.bf16.gmra.mxu0 %v1002
    %v1250 = vpop.f32.mrf.mxu0
    %v1251 = vadd.f32 %v1062, %v1250
    %v1252 = vpop.f32.mrf.mxu0
    %v1253 = vadd.f32 %v1062, %v1252
    %1254 = vmatmul.bf16.gmra.mxu0 %v1004
    %v1255 = vpop.f32.mrf.mxu0
    %v1256 = vadd.f32 %v1062, %v1255
    %v1257 = vpop.f32.mrf.mxu0
    %v1258 = vadd.f32 %v1062, %v1257
    %1259 = vmatmul.bf16.gmra.mxu0 %v1006
    %v1260 = vpop.f32.mrf.mxu0
    %v1261 = vadd.f32 %v1062, %v1260
    %v1262 = vpop.f32.mrf.mxu0
    %v1263 = vadd.f32 %v1062, %v1262
    %1264 = vmatmul.bf16.gmra.mxu0 %v1008
    %v1265 = vpop.f32.mrf.mxu0
    %v1266 = vadd.f32 %v1062, %v1265
    %v1267 = vpop.f32.mrf.mxu0
    %v1268 = vadd.f32 %v1062, %v1267
    %1269 = vmatmul.bf16.gmra.mxu0 %v1010
    %v1270 = vpop.f32.mrf.mxu0
    %v1271 = vadd.f32 %v1062, %v1270
    %v1272 = vpop.f32.mrf.mxu0
    %v1273 = vadd.f32 %v1062, %v1272
    %1274 = vmatmul.bf16.gmra.mxu0 %v1012
    %v1275 = vpop.f32.mrf.mxu0
    %v1276 = vadd.f32 %v1062, %v1275
    %v1277 = vpop.f32.mrf.mxu0
    %v1278 = vadd.f32 %v1062, %v1277
    %1279 = vmatmul.bf16.gmra.mxu0 %v1014
    %v1280 = vpop.f32.mrf.mxu0
    %v1281 = vadd.f32 %v1062, %v1280
    %v1282 = vpop.f32.mrf.mxu0
    %v1283 = vadd.f32 %v1062, %v1282
    %1284 = vmatmul.bf16.gmra.mxu0 %v1016
    %v1285 = vpop.f32.mrf.mxu0
    %v1286 = vadd.f32 %v1062, %v1285
    %v1287 = vpop.f32.mrf.mxu0
    %v1288 = vadd.f32 %v1062, %v1287
    %1289 = vmatmul.bf16.gmra.mxu0 %v1018
    %v1290 = vpop.f32.mrf.mxu0
    %v1291 = vadd.f32 %v1062, %v1290
    %v1292 = vpop.f32.mrf.mxu0
    %v1293 = vadd.f32 %v1062, %v1292
    %1294 = vmatmul.bf16.gmra.mxu0 %v1020
    %v1295 = vpop.f32.mrf.mxu0
    %v1296 = vadd.f32 %v1062, %v1295
    %v1297 = vpop.f32.mrf.mxu0
    %v1298 = vadd.f32 %v1062, %v1297
    %1299 = vmatmul.bf16.gmra.mxu0 %v1022
    %v1300 = vpop.f32.mrf.mxu0
    %v1301 = vadd.f32 %v1062, %v1300
    %v1302 = vpop.f32.mrf.mxu0
    %v1303 = vadd.f32 %v1062, %v1302
    %1304 = vmatmul.bf16.gmra.mxu0 %v1024
    %v1305 = vpop.f32.mrf.mxu0
    %v1306 = vadd.f32 %v1062, %v1305
    %v1307 = vpop.f32.mrf.mxu0
    %v1308 = vadd.f32 %v1062, %v1307
    %1309 = vmatmul.bf16.gmra.mxu0 %v1026
    %v1310 = vpop.f32.mrf.mxu0
    %v1311 = vadd.f32 %v1062, %v1310
    %v1312 = vpop.f32.mrf.mxu0
    %v1313 = vadd.f32 %v1062, %v1312
    %1314 = vdwg.mxu0
    %1315 = vmatpush.bf16.msra.mxu0 %v1192
    %1316 = vmatpush.bf16.msra.mxu0 %v1190
    %1317 = vmatpush.bf16.msra.mxu0 %v1188
    %1318 = vmatpush.bf16.msra.mxu0 %v1186
    %1319 = vmatpush.bf16.msra.mxu0 %v1184
    %1320 = vmatpush.bf16.msra.mxu0 %v1182
    %1321 = vmatpush.bf16.msra.mxu0 %v1180
    %1322 = vmatpush.bf16.msra.mxu0 %v1178
    %1323 = vmatmul.bf16.gmra.mxu0 %v997
    %v1324 = vpop.f32.mrf.mxu0
    %v1325 = vadd.f32 %v1236, %v1324
    %v1326 = vpop.f32.mrf.mxu0
    %v1327 = vadd.f32 %v1238, %v1326
    %1328 = vmatmul.bf16.gmra.mxu0 %v999
    %v1329 = vpop.f32.mrf.mxu0
    %v1330 = vadd.f32 %v1241, %v1329
    %v1331 = vpop.f32.mrf.mxu0
    %v1332 = vadd.f32 %v1243, %v1331
    %1333 = vmatmul.bf16.gmra.mxu0 %v1001
    %v1334 = vpop.f32.mrf.mxu0
    %v1335 = vadd.f32 %v1246, %v1334
    %v1336 = vpop.f32.mrf.mxu0
    %v1337 = vadd.f32 %v1248, %v1336
    %1338 = vmatmul.bf16.gmra.mxu0 %v1003
    %v1339 = vpop.f32.mrf.mxu0
    %v1340 = vadd.f32 %v1251, %v1339
    %v1341 = vpop.f32.mrf.mxu0
    %v1342 = vadd.f32 %v1253, %v1341
    %1343 = vmatmul.bf16.gmra.mxu0 %v1005
    %v1344 = vpop.f32.mrf.mxu0
    %v1345 = vadd.f32 %v1256, %v1344
    %v1346 = vpop.f32.mrf.mxu0
    %v1347 = vadd.f32 %v1258, %v1346
    %1348 = vmatmul.bf16.gmra.mxu0 %v1007
    %v1349 = vpop.f32.mrf.mxu0
    %v1350 = vadd.f32 %v1261, %v1349
    %v1351 = vpop.f32.mrf.mxu0
    %v1352 = vadd.f32 %v1263, %v1351
    %1353 = vmatmul.bf16.gmra.mxu0 %v1009
    %v1354 = vpop.f32.mrf.mxu0
    %v1355 = vadd.f32 %v1266, %v1354
    %v1356 = vpop.f32.mrf.mxu0
    %v1357 = vadd.f32 %v1268, %v1356
    %1358 = vmatmul.bf16.gmra.mxu0 %v1011
    %v1359 = vpop.f32.mrf.mxu0
    %v1360 = vadd.f32 %v1271, %v1359
    %v1361 = vpop.f32.mrf.mxu0
    %v1362 = vadd.f32 %v1273, %v1361
    %1363 = vmatmul.bf16.gmra.mxu0 %v1013
    %v1364 = vpop.f32.mrf.mxu0
    %v1365 = vadd.f32 %v1276, %v1364
    %v1366 = vpop.f32.mrf.mxu0
    %v1367 = vadd.f32 %v1278, %v1366
    %1368 = vmatmul.bf16.gmra.mxu0 %v1015
    %v1369 = vpop.f32.mrf.mxu0
    %v1370 = vadd.f32 %v1281, %v1369
    %v1371 = vpop.f32.mrf.mxu0
    %v1372 = vadd.f32 %v1283, %v1371
    %1373 = vmatmul.bf16.gmra.mxu0 %v1017
    %v1374 = vpop.f32.mrf.mxu0
    %v1375 = vadd.f32 %v1286, %v1374
    %v1376 = vpop.f32.mrf.mxu0
    %v1377 = vadd.f32 %v1288, %v1376
    %1378 = vmatmul.bf16.gmra.mxu0 %v1019
    %v1379 = vpop.f32.mrf.mxu0
    %v1380 = vadd.f32 %v1291, %v1379
    %v1381 = vpop.f32.mrf.mxu0
    %v1382 = vadd.f32 %v1293, %v1381
    %1383 = vmatmul.bf16.gmra.mxu0 %v1021
    %v1384 = vpop.f32.mrf.mxu0
    %v1385 = vadd.f32 %v1296, %v1384
    %v1386 = vpop.f32.mrf.mxu0
    %v1387 = vadd.f32 %v1298, %v1386
    %1388 = vmatmul.bf16.gmra.mxu0 %v1023
    %v1389 = vpop.f32.mrf.mxu0
    %v1390 = vadd.f32 %v1301, %v1389
    %v1391 = vpop.f32.mrf.mxu0
    %v1392 = vadd.f32 %v1303, %v1391
    %1393 = vmatmul.bf16.gmra.mxu0 %v1025
    %v1394 = vpop.f32.mrf.mxu0
    %v1395 = vadd.f32 %v1306, %v1394
    %v1396 = vpop.f32.mrf.mxu0
    %v1397 = vadd.f32 %v1308, %v1396
    %1398 = vmatmul.bf16.gmra.mxu0 %v1027
    %v1399 = vpop.f32.mrf.mxu0
    %v1400 = vadd.f32 %v1311, %v1399
    %v1401 = vpop.f32.mrf.mxu0
    %v1402 = vadd.f32 %v1313, %v1401
    %1403 = vdwg.mxu0
    %1404 = vmatpush.bf16.msra.mxu0 %v1177
    %1405 = vmatpush.bf16.msra.mxu0 %v1175
    %1406 = vmatpush.bf16.msra.mxu0 %v1173
    %1407 = vmatpush.bf16.msra.mxu0 %v1171
    %1408 = vmatpush.bf16.msra.mxu0 %v1169
    %1409 = vmatpush.bf16.msra.mxu0 %v1167
    %1410 = vmatpush.bf16.msra.mxu0 %v1165
    %1411 = vmatpush.bf16.msra.mxu0 %v1163
    %1412 = vmatmul.bf16.gmra.mxu0 %v996
    %v1413 = vpop.f32.mrf.mxu0
    %v1414 = vadd.f32 %v1063, %v1413
    %v1415 = vpop.f32.mrf.mxu0
    %v1416 = vadd.f32 %v1063, %v1415
    %1417 = vmatmul.bf16.gmra.mxu0 %v998
    %v1418 = vpop.f32.mrf.mxu0
    %v1419 = vadd.f32 %v1063, %v1418
    %v1420 = vpop.f32.mrf.mxu0
    %v1421 = vadd.f32 %v1063, %v1420
    %1422 = vmatmul.bf16.gmra.mxu0 %v1000
    %v1423 = vpop.f32.mrf.mxu0
    %v1424 = vadd.f32 %v1063, %v1423
    %v1425 = vpop.f32.mrf.mxu0
    %v1426 = vadd.f32 %v1063, %v1425
    %1427 = vmatmul.bf16.gmra.mxu0 %v1002
    %v1428 = vpop.f32.mrf.mxu0
    %v1429 = vadd.f32 %v1063, %v1428
    %v1430 = vpop.f32.mrf.mxu0
    %v1431 = vadd.f32 %v1063, %v1430
    %1432 = vmatmul.bf16.gmra.mxu0 %v1004
    %v1433 = vpop.f32.mrf.mxu0
    %v1434 = vadd.f32 %v1063, %v1433
    %v1435 = vpop.f32.mrf.mxu0
    %v1436 = vadd.f32 %v1063, %v1435
    %1437 = vmatmul.bf16.gmra.mxu0 %v1006
    %v1438 = vpop.f32.mrf.mxu0
    %v1439 = vadd.f32 %v1063, %v1438
    %v1440 = vpop.f32.mrf.mxu0
    %v1441 = vadd.f32 %v1063, %v1440
    %1442 = vmatmul.bf16.gmra.mxu0 %v1008
    %v1443 = vpop.f32.mrf.mxu0
    %v1444 = vadd.f32 %v1063, %v1443
    %v1445 = vpop.f32.mrf.mxu0
    %v1446 = vadd.f32 %v1063, %v1445
    %1447 = vmatmul.bf16.gmra.mxu0 %v1010
    %v1448 = vpop.f32.mrf.mxu0
    %v1449 = vadd.f32 %v1063, %v1448
    %v1450 = vpop.f32.mrf.mxu0
    %v1451 = vadd.f32 %v1063, %v1450
    %1452 = vmatmul.bf16.gmra.mxu0 %v1012
    %v1453 = vpop.f32.mrf.mxu0
    %v1454 = vadd.f32 %v1063, %v1453
    %v1455 = vpop.f32.mrf.mxu0
    %v1456 = vadd.f32 %v1063, %v1455
    %1457 = vmatmul.bf16.gmra.mxu0 %v1014
    %v1458 = vpop.f32.mrf.mxu0
    %v1459 = vadd.f32 %v1063, %v1458
    %v1460 = vpop.f32.mrf.mxu0
    %v1461 = vadd.f32 %v1063, %v1460
    %1462 = vmatmul.bf16.gmra.mxu0 %v1016
    %v1463 = vpop.f32.mrf.mxu0
    %v1464 = vadd.f32 %v1063, %v1463
    %v1465 = vpop.f32.mrf.mxu0
    %v1466 = vadd.f32 %v1063, %v1465
    %1467 = vmatmul.bf16.gmra.mxu0 %v1018
    %v1468 = vpop.f32.mrf.mxu0
    %v1469 = vadd.f32 %v1063, %v1468
    %v1470 = vpop.f32.mrf.mxu0
    %v1471 = vadd.f32 %v1063, %v1470
    %1472 = vmatmul.bf16.gmra.mxu0 %v1020
    %v1473 = vpop.f32.mrf.mxu0
    %v1474 = vadd.f32 %v1063, %v1473
    %v1475 = vpop.f32.mrf.mxu0
    %v1476 = vadd.f32 %v1063, %v1475
    %1477 = vmatmul.bf16.gmra.mxu0 %v1022
    %v1478 = vpop.f32.mrf.mxu0
    %v1479 = vadd.f32 %v1063, %v1478
    %v1480 = vpop.f32.mrf.mxu0
    %v1481 = vadd.f32 %v1063, %v1480
    %1482 = vmatmul.bf16.gmra.mxu0 %v1024
    %v1483 = vpop.f32.mrf.mxu0
    %v1484 = vadd.f32 %v1063, %v1483
    %v1485 = vpop.f32.mrf.mxu0
    %v1486 = vadd.f32 %v1063, %v1485
    %1487 = vmatmul.bf16.gmra.mxu0 %v1026
    %v1488 = vpop.f32.mrf.mxu0
    %v1489 = vadd.f32 %v1063, %v1488
    %v1490 = vpop.f32.mrf.mxu0
    %v1491 = vadd.f32 %v1063, %v1490
    %1492 = vdwg.mxu0
    %1493 = vmatpush.bf16.msra.mxu0 %v1193
    %1494 = vmatpush.bf16.msra.mxu0 %v1191
    %1495 = vmatpush.bf16.msra.mxu0 %v1189
    %1496 = vmatpush.bf16.msra.mxu0 %v1187
    %1497 = vmatpush.bf16.msra.mxu0 %v1185
    %1498 = vmatpush.bf16.msra.mxu0 %v1183
    %1499 = vmatpush.bf16.msra.mxu0 %v1181
    %1500 = vmatpush.bf16.msra.mxu0 %v1179
    %1501 = vmatmul.bf16.gmra.mxu0 %v997
    %v1502 = vpop.f32.mrf.mxu0
    %v1503 = vadd.f32 %v1414, %v1502
    %v1504 = vpop.f32.mrf.mxu0
    %v1505 = vadd.f32 %v1416, %v1504
    %1506 = vmatmul.bf16.gmra.mxu0 %v999
    %v1507 = vpop.f32.mrf.mxu0
    %v1508 = vadd.f32 %v1419, %v1507
    %v1509 = vpop.f32.mrf.mxu0
    %v1510 = vadd.f32 %v1421, %v1509
    %1511 = vmatmul.bf16.gmra.mxu0 %v1001
    %v1512 = vpop.f32.mrf.mxu0
    %v1513 = vadd.f32 %v1424, %v1512
    %v1514 = vpop.f32.mrf.mxu0
    %v1515 = vadd.f32 %v1426, %v1514
    %1516 = vmatmul.bf16.gmra.mxu0 %v1003
    %v1517 = vpop.f32.mrf.mxu0
    %v1518 = vadd.f32 %v1429, %v1517
    %v1519 = vpop.f32.mrf.mxu0
    %v1520 = vadd.f32 %v1431, %v1519
    %1521 = vmatmul.bf16.gmra.mxu0 %v1005
    %v1522 = vpop.f32.mrf.mxu0
    %v1523 = vadd.f32 %v1434, %v1522
    %v1524 = vpop.f32.mrf.mxu0
    %v1525 = vadd.f32 %v1436, %v1524
    %1526 = vmatmul.bf16.gmra.mxu0 %v1007
    %v1527 = vpop.f32.mrf.mxu0
    %v1528 = vadd.f32 %v1439, %v1527
    %v1529 = vpop.f32.mrf.mxu0
    %v1530 = vadd.f32 %v1441, %v1529
    %1531 = vmatmul.bf16.gmra.mxu0 %v1009
    %v1532 = vpop.f32.mrf.mxu0
    %v1533 = vadd.f32 %v1444, %v1532
    %v1534 = vpop.f32.mrf.mxu0
    %v1535 = vadd.f32 %v1446, %v1534
    %1536 = vmatmul.bf16.gmra.mxu0 %v1011
    %v1537 = vpop.f32.mrf.mxu0
    %v1538 = vadd.f32 %v1449, %v1537
    %v1539 = vpop.f32.mrf.mxu0
    %v1540 = vadd.f32 %v1451, %v1539
    %1541 = vmatmul.bf16.gmra.mxu0 %v1013
    %v1542 = vpop.f32.mrf.mxu0
    %v1543 = vadd.f32 %v1454, %v1542
    %v1544 = vpop.f32.mrf.mxu0
    %v1545 = vadd.f32 %v1456, %v1544
    %1546 = vmatmul.bf16.gmra.mxu0 %v1015
    %v1547 = vpop.f32.mrf.mxu0
    %v1548 = vadd.f32 %v1459, %v1547
    %v1549 = vpop.f32.mrf.mxu0
    %v1550 = vadd.f32 %v1461, %v1549
    %1551 = vmatmul.bf16.gmra.mxu0 %v1017
    %v1552 = vpop.f32.mrf.mxu0
    %v1553 = vadd.f32 %v1464, %v1552
    %v1554 = vpop.f32.mrf.mxu0
    %v1555 = vadd.f32 %v1466, %v1554
    %1556 = vmatmul.bf16.gmra.mxu0 %v1019
    %v1557 = vpop.f32.mrf.mxu0
    %v1558 = vadd.f32 %v1469, %v1557
    %v1559 = vpop.f32.mrf.mxu0
    %v1560 = vadd.f32 %v1471, %v1559
    %1561 = vmatmul.bf16.gmra.mxu0 %v1021
    %v1562 = vpop.f32.mrf.mxu0
    %v1563 = vadd.f32 %v1474, %v1562
    %v1564 = vpop.f32.mrf.mxu0
    %v1565 = vadd.f32 %v1476, %v1564
    %1566 = vmatmul.bf16.gmra.mxu0 %v1023
    %v1567 = vpop.f32.mrf.mxu0
    %v1568 = vadd.f32 %v1479, %v1567
    %v1569 = vpop.f32.mrf.mxu0
    %v1570 = vadd.f32 %v1481, %v1569
    %1571 = vmatmul.bf16.gmra.mxu0 %v1025
    %v1572 = vpop.f32.mrf.mxu0
    %v1573 = vadd.f32 %v1484, %v1572
    %v1574 = vpop.f32.mrf.mxu0
    %v1575 = vadd.f32 %v1486, %v1574
    %1576 = vmatmul.bf16.gmra.mxu0 %v1027
    %v1577 = vpop.f32.mrf.mxu0
    %v1578 = vadd.f32 %v1489, %v1577
    %v1579 = vpop.f32.mrf.mxu0
    %v1580 = vadd.f32 %v1491, %v1579
    %1581 = vdwg.mxu0
    %v1582 = vpack.c.bf16 %v1503, %v1325
    %v1583 = vpack.c.bf16 %v1505, %v1327
    %v1584 = vpack.c.bf16 %v1508, %v1330
    %v1585 = vpack.c.bf16 %v1510, %v1332
    %v1586 = vpack.c.bf16 %v1513, %v1335
    %v1587 = vpack.c.bf16 %v1515, %v1337
    %v1588 = vpack.c.bf16 %v1518, %v1340
    %v1589 = vpack.c.bf16 %v1520, %v1342
    %v1590 = vpack.c.bf16 %v1523, %v1345
    %v1591 = vpack.c.bf16 %v1525, %v1347
    %v1592 = vpack.c.bf16 %v1528, %v1350
    %v1593 = vpack.c.bf16 %v1530, %v1352
    %v1594 = vpack.c.bf16 %v1533, %v1355
    %v1595 = vpack.c.bf16 %v1535, %v1357
    %v1596 = vpack.c.bf16 %v1538, %v1360
    %v1597 = vpack.c.bf16 %v1540, %v1362
    %v1598 = vpack.c.bf16 %v1543, %v1365
    %v1599 = vpack.c.bf16 %v1545, %v1367
    %v1600 = vpack.c.bf16 %v1548, %v1370
    %v1601 = vpack.c.bf16 %v1550, %v1372
    %v1602 = vpack.c.bf16 %v1553, %v1375
    %v1603 = vpack.c.bf16 %v1555, %v1377
    %v1604 = vpack.c.bf16 %v1558, %v1380
    %v1605 = vpack.c.bf16 %v1560, %v1382
    %v1606 = vpack.c.bf16 %v1563, %v1385
    %v1607 = vpack.c.bf16 %v1565, %v1387
    %v1608 = vpack.c.bf16 %v1568, %v1390
    %v1609 = vpack.c.bf16 %v1570, %v1392
    %v1610 = vpack.c.bf16 %v1573, %v1395
    %v1611 = vpack.c.bf16 %v1575, %v1397
    %v1612 = vpack.c.bf16 %v1578, %v1400
    %v1613 = vpack.c.bf16 %v1580, %v1402
    %v1614 = vunpack.c.l.bf16 %v1582
    %v1615 = vunpack.c.h.bf16 %v1582
    %v1616 = vunpack.c.l.bf16 %v1583
    %v1617 = vunpack.c.h.bf16 %v1583
    %v1618 = vunpack.c.l.bf16 %v1584
    %v1619 = vunpack.c.h.bf16 %v1584
    %v1620 = vunpack.c.l.bf16 %v1585
    %v1621 = vunpack.c.h.bf16 %v1585
    %v1622 = vunpack.c.l.bf16 %v1586
    %v1623 = vunpack.c.h.bf16 %v1586
    %v1624 = vunpack.c.l.bf16 %v1587
    %v1625 = vunpack.c.h.bf16 %v1587
    %v1626 = vunpack.c.l.bf16 %v1588
    %v1627 = vunpack.c.h.bf16 %v1588
    %v1628 = vunpack.c.l.bf16 %v1589
    %v1629 = vunpack.c.h.bf16 %v1589
    %v1630 = vunpack.c.l.bf16 %v1590
    %v1631 = vunpack.c.h.bf16 %v1590
    %v1632 = vunpack.c.l.bf16 %v1591
    %v1633 = vunpack.c.h.bf16 %v1591
    %v1634 = vunpack.c.l.bf16 %v1592
    %v1635 = vunpack.c.h.bf16 %v1592
    %v1636 = vunpack.c.l.bf16 %v1593
    %v1637 = vunpack.c.h.bf16 %v1593
    %v1638 = vunpack.c.l.bf16 %v1594
    %v1639 = vunpack.c.h.bf16 %v1594
    %v1640 = vunpack.c.l.bf16 %v1595
    %v1641 = vunpack.c.h.bf16 %v1595
    %v1642 = vunpack.c.l.bf16 %v1596
    %v1643 = vunpack.c.h.bf16 %v1596
    %v1644 = vunpack.c.l.bf16 %v1597
    %v1645 = vunpack.c.h.bf16 %v1597
    %v1646 = vunpack.c.l.bf16 %v1598
    %v1647 = vunpack.c.h.bf16 %v1598
    %v1648 = vunpack.c.l.bf16 %v1599
    %v1649 = vunpack.c.h.bf16 %v1599
    %v1650 = vunpack.c.l.bf16 %v1600
    %v1651 = vunpack.c.h.bf16 %v1600
    %v1652 = vunpack.c.l.bf16 %v1601
    %v1653 = vunpack.c.h.bf16 %v1601
    %v1654 = vunpack.c.l.bf16 %v1602
    %v1655 = vunpack.c.h.bf16 %v1602
    %v1656 = vunpack.c.l.bf16 %v1603
    %v1657 = vunpack.c.h.bf16 %v1603
    %v1658 = vunpack.c.l.bf16 %v1604
    %v1659 = vunpack.c.h.bf16 %v1604
    %v1660 = vunpack.c.l.bf16 %v1605
    %v1661 = vunpack.c.h.bf16 %v1605
    %v1662 = vunpack.c.l.bf16 %v1606
    %v1663 = vunpack.c.h.bf16 %v1606
    %v1664 = vunpack.c.l.bf16 %v1607
    %v1665 = vunpack.c.h.bf16 %v1607
    %v1666 = vunpack.c.l.bf16 %v1608
    %v1667 = vunpack.c.h.bf16 %v1608
    %v1668 = vunpack.c.l.bf16 %v1609
    %v1669 = vunpack.c.h.bf16 %v1609
    %v1670 = vunpack.c.l.bf16 %v1610
    %v1671 = vunpack.c.h.bf16 %v1610
    %v1672 = vunpack.c.l.bf16 %v1611
    %v1673 = vunpack.c.h.bf16 %v1611
    %v1674 = vunpack.c.l.bf16 %v1612
    %v1675 = vunpack.c.h.bf16 %v1612
    %v1676 = vunpack.c.l.bf16 %v1613
    %v1677 = vunpack.c.h.bf16 %v1613
    %v1678 = vmax.f32 %v1614, 0.0
    %v1679 = vmax.f32 %v1615, 0.0
    %v1680 = vmax.f32 %v1616, 0.0
    %v1681 = vmax.f32 %v1617, 0.0
    %v1682 = vmax.f32 %v1618, 0.0
    %v1683 = vmax.f32 %v1619, 0.0
    %v1684 = vmax.f32 %v1620, 0.0
    %v1685 = vmax.f32 %v1621, 0.0
    %v1686 = vmax.f32 %v1622, 0.0
    %v1687 = vmax.f32 %v1623, 0.0
    %v1688 = vmax.f32 %v1624, 0.0
    %v1689 = vmax.f32 %v1625, 0.0
    %v1690 = vmax.f32 %v1626, 0.0
    %v1691 = vmax.f32 %v1627, 0.0
    %v1692 = vmax.f32 %v1628, 0.0
    %v1693 = vmax.f32 %v1629, 0.0
    %v1694 = vmax.f32 %v1630, 0.0
    %v1695 = vmax.f32 %v1631, 0.0
    %v1696 = vmax.f32 %v1632, 0.0
    %v1697 = vmax.f32 %v1633, 0.0
    %v1698 = vmax.f32 %v1634, 0.0
    %v1699 = vmax.f32 %v1635, 0.0
    %v1700 = vmax.f32 %v1636, 0.0
    %v1701 = vmax.f32 %v1637, 0.0
    %v1702 = vmax.f32 %v1638, 0.0
    %v1703 = vmax.f32 %v1639, 0.0
    %v1704 = vmax.f32 %v1640, 0.0
    %v1705 = vmax.f32 %v1641, 0.0
    %v1706 = vmax.f32 %v1642, 0.0
    %v1707 = vmax.f32 %v1643, 0.0
    %v1708 = vmax.f32 %v1644, 0.0
    %v1709 = vmax.f32 %v1645, 0.0
    %v1710 = vmax.f32 %v1646, 0.0
    %v1711 = vmax.f32 %v1647, 0.0
    %v1712 = vmax.f32 %v1648, 0.0
    %v1713 = vmax.f32 %v1649, 0.0
    %v1714 = vmax.f32 %v1650, 0.0
    %v1715 = vmax.f32 %v1651, 0.0
    %v1716 = vmax.f32 %v1652, 0.0
    %v1717 = vmax.f32 %v1653, 0.0
    %v1718 = vmax.f32 %v1654, 0.0
    %v1719 = vmax.f32 %v1655, 0.0
    %v1720 = vmax.f32 %v1656, 0.0
    %v1721 = vmax.f32 %v1657, 0.0
    %v1722 = vmax.f32 %v1658, 0.0
    %v1723 = vmax.f32 %v1659, 0.0
    %v1724 = vmax.f32 %v1660, 0.0
    %v1725 = vmax.f32 %v1661, 0.0
    %v1726 = vmax.f32 %v1662, 0.0
    %v1727 = vmax.f32 %v1663, 0.0
    %v1728 = vmax.f32 %v1664, 0.0
    %v1729 = vmax.f32 %v1665, 0.0
    %v1730 = vmax.f32 %v1666, 0.0
    %v1731 = vmax.f32 %v1667, 0.0
    %v1732 = vmax.f32 %v1668, 0.0
    %v1733 = vmax.f32 %v1669, 0.0
    %v1734 = vmax.f32 %v1670, 0.0
    %v1735 = vmax.f32 %v1671, 0.0
    %v1736 = vmax.f32 %v1672, 0.0
    %v1737 = vmax.f32 %v1673, 0.0
    %v1738 = vmax.f32 %v1674, 0.0
    %v1739 = vmax.f32 %v1675, 0.0
    %v1740 = vmax.f32 %v1676, 0.0
    %v1741 = vmax.f32 %v1677, 0.0
    %v1742 = vpack.c.bf16 %v1680, %v1678
    %v1743 = vpack.c.bf16 %v1681, %v1679
    %v1744 = vpack.c.bf16 %v1684, %v1682
    %v1745 = vpack.c.bf16 %v1685, %v1683
    %v1746 = vpack.c.bf16 %v1688, %v1686
    %v1747 = vpack.c.bf16 %v1689, %v1687
    %v1748 = vpack.c.bf16 %v1692, %v1690
    %v1749 = vpack.c.bf16 %v1693, %v1691
    %v1750 = vpack.c.bf16 %v1696, %v1694
    %v1751 = vpack.c.bf16 %v1697, %v1695
    %v1752 = vpack.c.bf16 %v1700, %v1698
    %v1753 = vpack.c.bf16 %v1701, %v1699
    %v1754 = vpack.c.bf16 %v1704, %v1702
    %v1755 = vpack.c.bf16 %v1705, %v1703
    %v1756 = vpack.c.bf16 %v1708, %v1706
    %v1757 = vpack.c.bf16 %v1709, %v1707
    %v1758 = vpack.c.bf16 %v1712, %v1710
    %v1759 = vpack.c.bf16 %v1713, %v1711
    %v1760 = vpack.c.bf16 %v1716, %v1714
    %v1761 = vpack.c.bf16 %v1717, %v1715
    %v1762 = vpack.c.bf16 %v1720, %v1718
    %v1763 = vpack.c.bf16 %v1721, %v1719
    %v1764 = vpack.c.bf16 %v1724, %v1722
    %v1765 = vpack.c.bf16 %v1725, %v1723
    %v1766 = vpack.c.bf16 %v1728, %v1726
    %v1767 = vpack.c.bf16 %v1729, %v1727
    %v1768 = vpack.c.bf16 %v1732, %v1730
    %v1769 = vpack.c.bf16 %v1733, %v1731
    %v1770 = vpack.c.bf16 %v1736, %v1734
    %v1771 = vpack.c.bf16 %v1737, %v1735
    %v1772 = vpack.c.bf16 %v1740, %v1738
    %v1773 = vpack.c.bf16 %v1741, %v1739
    %v1774 = vld [vmem:[#allocation3] sm:$0xff]
    %v1775 = vld [vmem:[#allocation3 + $0x8] sm:$0xff]
    %v1776 = vld [vmem:[#allocation3 + $0x10] sm:$0xff]
    %v1777 = vld [vmem:[#allocation3 + $0x18] sm:$0xff]
    %v1778 = vld [vmem:[#allocation3 + $0x20] sm:$0xff]
    %v1779 = vld [vmem:[#allocation3 + $0x28] sm:$0xff]
    %v1780 = vld [vmem:[#allocation3 + $0x30] sm:$0xff]
    %v1781 = vld [vmem:[#allocation3 + $0x38] sm:$0xff]
    %v1782 = vld [vmem:[#allocation3 + $0x40] sm:$0xff]
    %v1783 = vld [vmem:[#allocation3 + $0x48] sm:$0xff]
    %v1784 = vld [vmem:[#allocation3 + $0x50] sm:$0xff]
    %v1785 = vld [vmem:[#allocation3 + $0x58] sm:$0xff]
    %v1786 = vld [vmem:[#allocation3 + $0x60] sm:$0xff]
    %v1787 = vld [vmem:[#allocation3 + $0x68] sm:$0xff]
    %v1788 = vld [vmem:[#allocation3 + $0x70] sm:$0xff]
    %v1789 = vld [vmem:[#allocation3 + $0x78] sm:$0xff]
    %v1790 = vld [vmem:[#allocation3 + $0x80] sm:$0xff]
    %v1791 = vld [vmem:[#allocation3 + $0x88] sm:$0xff]
    %v1792 = vld [vmem:[#allocation3 + $0x90] sm:$0xff]
    %v1793 = vld [vmem:[#allocation3 + $0x98] sm:$0xff]
    %v1794 = vld [vmem:[#allocation3 + $0xa0] sm:$0xff]
    %v1795 = vld [vmem:[#allocation3 + $0xa8] sm:$0xff]
    %v1796 = vld [vmem:[#allocation3 + $0xb0] sm:$0xff]
    %v1797 = vld [vmem:[#allocation3 + $0xb8] sm:$0xff]
    %v1798 = vld [vmem:[#allocation3 + $0xc0] sm:$0xff]
    %v1799 = vld [vmem:[#allocation3 + $0xc8] sm:$0xff]
    %v1800 = vld [vmem:[#allocation3 + $0xd0] sm:$0xff]
    %v1801 = vld [vmem:[#allocation3 + $0xd8] sm:$0xff]
    %v1802 = vld [vmem:[#allocation3 + $0xe0] sm:$0xff]
    %v1803 = vld [vmem:[#allocation3 + $0xe8] sm:$0xff]
    %v1804 = vld [vmem:[#allocation3 + $0xf0] sm:$0xff]
    %v1805 = vld [vmem:[#allocation3 + $0xf8] sm:$0xff]
    %v1806 = vld [vmem:[%s8] sm:$0x3]
    %v1808 = vperm.slane %v1806, 0
    %v1809 = vperm.slane %v1806, 1
    %v1844 = vunpack.c.l.b16 %v1774
    %v1845 = vunpack.c.h.b16 %v1774
    %v1846 = vunpack.c.l.b16 %v1775
    %v1847 = vunpack.c.h.b16 %v1775
    %v1848 = vunpack.c.l.b16 %v1776
    %v1849 = vunpack.c.h.b16 %v1776
    %v1850 = vunpack.c.l.b16 %v1777
    %v1851 = vunpack.c.h.b16 %v1777
    %v1852 = vunpack.c.l.b16 %v1778
    %v1853 = vunpack.c.h.b16 %v1778
    %v1854 = vunpack.c.l.b16 %v1779
    %v1855 = vunpack.c.h.b16 %v1779
    %v1856 = vunpack.c.l.b16 %v1780
    %v1857 = vunpack.c.h.b16 %v1780
    %v1858 = vunpack.c.l.b16 %v1781
    %v1859 = vunpack.c.h.b16 %v1781
    %v1860 = vunpack.c.l.b16 %v1782
    %v1861 = vunpack.c.h.b16 %v1782
    %v1862 = vunpack.c.l.b16 %v1783
    %v1863 = vunpack.c.h.b16 %v1783
    %v1864 = vunpack.c.l.b16 %v1784
    %v1865 = vunpack.c.h.b16 %v1784
    %v1866 = vunpack.c.l.b16 %v1785
    %v1867 = vunpack.c.h.b16 %v1785
    %v1868 = vunpack.c.l.b16 %v1786
    %v1869 = vunpack.c.h.b16 %v1786
    %v1870 = vunpack.c.l.b16 %v1787
    %v1871 = vunpack.c.h.b16 %v1787
    %v1872 = vunpack.c.l.b16 %v1788
    %v1873 = vunpack.c.h.b16 %v1788
    %v1874 = vunpack.c.l.b16 %v1789
    %v1875 = vunpack.c.h.b16 %v1789
    %v1876 = vunpack.c.l.b16 %v1790
    %v1877 = vunpack.c.h.b16 %v1790
    %v1878 = vunpack.c.l.b16 %v1791
    %v1879 = vunpack.c.h.b16 %v1791
    %v1880 = vunpack.c.l.b16 %v1792
    %v1881 = vunpack.c.h.b16 %v1792
    %v1882 = vunpack.c.l.b16 %v1793
    %v1883 = vunpack.c.h.b16 %v1793
    %v1884 = vunpack.c.l.b16 %v1794
    %v1885 = vunpack.c.h.b16 %v1794
    %v1886 = vunpack.c.l.b16 %v1795
    %v1887 = vunpack.c.h.b16 %v1795
    %v1888 = vunpack.c.l.b16 %v1796
    %v1889 = vunpack.c.h.b16 %v1796
    %v1890 = vunpack.c.l.b16 %v1797
    %v1891 = vunpack.c.h.b16 %v1797
    %v1892 = vunpack.c.l.b16 %v1798
    %v1893 = vunpack.c.h.b16 %v1798
    %v1894 = vunpack.c.l.b16 %v1799
    %v1895 = vunpack.c.h.b16 %v1799
    %v1896 = vunpack.c.l.b16 %v1800
    %v1897 = vunpack.c.h.b16 %v1800
    %v1898 = vunpack.c.l.b16 %v1801
    %v1899 = vunpack.c.h.b16 %v1801
    %v1900 = vunpack.c.l.b16 %v1802
    %v1901 = vunpack.c.h.b16 %v1802
    %v1902 = vunpack.c.l.b16 %v1803
    %v1903 = vunpack.c.h.b16 %v1803
    %v1904 = vunpack.c.l.b16 %v1804
    %v1905 = vunpack.c.h.b16 %v1804
    %v1906 = vunpack.c.l.b16 %v1805
    %v1907 = vunpack.c.h.b16 %v1805
    %v1908 = vpack.c.b16 %v1846, %v1844
    %v1909 = vpack.c.b16 %v1847, %v1845
    %v1910 = vpack.c.b16 %v1850, %v1848
    %v1911 = vpack.c.b16 %v1851, %v1849
    %v1912 = vpack.c.b16 %v1854, %v1852
    %v1913 = vpack.c.b16 %v1855, %v1853
    %v1914 = vpack.c.b16 %v1858, %v1856
    %v1915 = vpack.c.b16 %v1859, %v1857
    %v1916 = vpack.c.b16 %v1862, %v1860
    %v1917 = vpack.c.b16 %v1863, %v1861
    %v1918 = vpack.c.b16 %v1866, %v1864
    %v1919 = vpack.c.b16 %v1867, %v1865
    %v1920 = vpack.c.b16 %v1870, %v1868
    %v1921 = vpack.c.b16 %v1871, %v1869
    %v1922 = vpack.c.b16 %v1874, %v1872
    %v1923 = vpack.c.b16 %v1875, %v1873
    %v1924 = vpack.c.b16 %v1878, %v1876
    %v1925 = vpack.c.b16 %v1879, %v1877
    %v1926 = vpack.c.b16 %v1882, %v1880
    %v1927 = vpack.c.b16 %v1883, %v1881
    %v1928 = vpack.c.b16 %v1886, %v1884
    %v1929 = vpack.c.b16 %v1887, %v1885
    %v1930 = vpack.c.b16 %v1890, %v1888
    %v1931 = vpack.c.b16 %v1891, %v1889
    %v1932 = vpack.c.b16 %v1894, %v1892
    %v1933 = vpack.c.b16 %v1895, %v1893
    %v1934 = vpack.c.b16 %v1898, %v1896
    %v1935 = vpack.c.b16 %v1899, %v1897
    %v1936 = vpack.c.b16 %v1902, %v1900
    %v1937 = vpack.c.b16 %v1903, %v1901
    %v1938 = vpack.c.b16 %v1906, %v1904
    %v1939 = vpack.c.b16 %v1907, %v1905
    %1972 = vmatpush.bf16.msra.mxu0 %v1922
    %1973 = vmatpush.bf16.msra.mxu0 %v1920
    %1974 = vmatpush.bf16.msra.mxu0 %v1918
    %1975 = vmatpush.bf16.msra.mxu0 %v1916
    %1976 = vmatpush.bf16.msra.mxu0 %v1914
    %1977 = vmatpush.bf16.msra.mxu0 %v1912
    %1978 = vmatpush.bf16.msra.mxu0 %v1910
    %1979 = vmatpush.bf16.msra.mxu0 %v1908
    %1980 = vmatmul.bf16.gmra.mxu0 %v1742
    %v1981 = vpop.f32.mrf.mxu0
    %v1982 = vadd.f32 %v1808, %v1981
    %v1983 = vpop.f32.mrf.mxu0
    %v1984 = vadd.f32 %v1808, %v1983
    %1985 = vmatmul.bf16.gmra.mxu0 %v1744
    %v1986 = vpop.f32.mrf.mxu0
    %v1987 = vadd.f32 %v1808, %v1986
    %v1988 = vpop.f32.mrf.mxu0
    %v1989 = vadd.f32 %v1808, %v1988
    %1990 = vmatmul.bf16.gmra.mxu0 %v1746
    %v1991 = vpop.f32.mrf.mxu0
    %v1992 = vadd.f32 %v1808, %v1991
    %v1993 = vpop.f32.mrf.mxu0
    %v1994 = vadd.f32 %v1808, %v1993
    %1995 = vmatmul.bf16.gmra.mxu0 %v1748
    %v1996 = vpop.f32.mrf.mxu0
    %v1997 = vadd.f32 %v1808, %v1996
    %v1998 = vpop.f32.mrf.mxu0
    %v1999 = vadd.f32 %v1808, %v1998
    %2000 = vmatmul.bf16.gmra.mxu0 %v1750
    %v2001 = vpop.f32.mrf.mxu0
    %v2002 = vadd.f32 %v1808, %v2001
    %v2003 = vpop.f32.mrf.mxu0
    %v2004 = vadd.f32 %v1808, %v2003
    %2005 = vmatmul.bf16.gmra.mxu0 %v1752
    %v2006 = vpop.f32.mrf.mxu0
    %v2007 = vadd.f32 %v1808, %v2006
    %v2008 = vpop.f32.mrf.mxu0
    %v2009 = vadd.f32 %v1808, %v2008
    %2010 = vmatmul.bf16.gmra.mxu0 %v1754
    %v2011 = vpop.f32.mrf.mxu0
    %v2012 = vadd.f32 %v1808, %v2011
    %v2013 = vpop.f32.mrf.mxu0
    %v2014 = vadd.f32 %v1808, %v2013
    %2015 = vmatmul.bf16.gmra.mxu0 %v1756
    %v2016 = vpop.f32.mrf.mxu0
    %v2017 = vadd.f32 %v1808, %v2016
    %v2018 = vpop.f32.mrf.mxu0
    %v2019 = vadd.f32 %v1808, %v2018
    %2020 = vmatmul.bf16.gmra.mxu0 %v1758
    %v2021 = vpop.f32.mrf.mxu0
    %v2022 = vadd.f32 %v1808, %v2021
    %v2023 = vpop.f32.mrf.mxu0
    %v2024 = vadd.f32 %v1808, %v2023
    %2025 = vmatmul.bf16.gmra.mxu0 %v1760
    %v2026 = vpop.f32.mrf.mxu0
    %v2027 = vadd.f32 %v1808, %v2026
    %v2028 = vpop.f32.mrf.mxu0
    %v2029 = vadd.f32 %v1808, %v2028
    %2030 = vmatmul.bf16.gmra.mxu0 %v1762
    %v2031 = vpop.f32.mrf.mxu0
    %v2032 = vadd.f32 %v1808, %v2031
    %v2033 = vpop.f32.mrf.mxu0
    %v2034 = vadd.f32 %v1808, %v2033
    %2035 = vmatmul.bf16.gmra.mxu0 %v1764
    %v2036 = vpop.f32.mrf.mxu0
    %v2037 = vadd.f32 %v1808, %v2036
    %v2038 = vpop.f32.mrf.mxu0
    %v2039 = vadd.f32 %v1808, %v2038
    %2040 = vmatmul.bf16.gmra.mxu0 %v1766
    %v2041 = vpop.f32.mrf.mxu0
    %v2042 = vadd.f32 %v1808, %v2041
    %v2043 = vpop.f32.mrf.mxu0
    %v2044 = vadd.f32 %v1808, %v2043
    %2045 = vmatmul.bf16.gmra.mxu0 %v1768
    %v2046 = vpop.f32.mrf.mxu0
    %v2047 = vadd.f32 %v1808, %v2046
    %v2048 = vpop.f32.mrf.mxu0
    %v2049 = vadd.f32 %v1808, %v2048
    %2050 = vmatmul.bf16.gmra.mxu0 %v1770
    %v2051 = vpop.f32.mrf.mxu0
    %v2052 = vadd.f32 %v1808, %v2051
    %v2053 = vpop.f32.mrf.mxu0
    %v2054 = vadd.f32 %v1808, %v2053
    %2055 = vmatmul.bf16.gmra.mxu0 %v1772
    %v2056 = vpop.f32.mrf.mxu0
    %v2057 = vadd.f32 %v1808, %v2056
    %v2058 = vpop.f32.mrf.mxu0
    %v2059 = vadd.f32 %v1808, %v2058
    %2060 = vdwg.mxu0
    %2061 = vmatpush.bf16.msra.mxu0 %v1938
    %2062 = vmatpush.bf16.msra.mxu0 %v1936
    %2063 = vmatpush.bf16.msra.mxu0 %v1934
    %2064 = vmatpush.bf16.msra.mxu0 %v1932
    %2065 = vmatpush.bf16.msra.mxu0 %v1930
    %2066 = vmatpush.bf16.msra.mxu0 %v1928
    %2067 = vmatpush.bf16.msra.mxu0 %v1926
    %2068 = vmatpush.bf16.msra.mxu0 %v1924
    %2069 = vmatmul.bf16.gmra.mxu0 %v1743
    %v2070 = vpop.f32.mrf.mxu0
    %v2071 = vadd.f32 %v1982, %v2070
    %v2072 = vpop.f32.mrf.mxu0
    %v2073 = vadd.f32 %v1984, %v2072
    %2074 = vmatmul.bf16.gmra.mxu0 %v1745
    %v2075 = vpop.f32.mrf.mxu0
    %v2076 = vadd.f32 %v1987, %v2075
    %v2077 = vpop.f32.mrf.mxu0
    %v2078 = vadd.f32 %v1989, %v2077
    %2079 = vmatmul.bf16.gmra.mxu0 %v1747
    %v2080 = vpop.f32.mrf.mxu0
    %v2081 = vadd.f32 %v1992, %v2080
    %v2082 = vpop.f32.mrf.mxu0
    %v2083 = vadd.f32 %v1994, %v2082
    %2084 = vmatmul.bf16.gmra.mxu0 %v1749
    %v2085 = vpop.f32.mrf.mxu0
    %v2086 = vadd.f32 %v1997, %v2085
    %v2087 = vpop.f32.mrf.mxu0
    %v2088 = vadd.f32 %v1999, %v2087
    %2089 = vmatmul.bf16.gmra.mxu0 %v1751
    %v2090 = vpop.f32.mrf.mxu0
    %v2091 = vadd.f32 %v2002, %v2090
    %v2092 = vpop.f32.mrf.mxu0
    %v2093 = vadd.f32 %v2004, %v2092
    %2094 = vmatmul.bf16.gmra.mxu0 %v1753
    %v2095 = vpop.f32.mrf.mxu0
    %v2096 = vadd.f32 %v2007, %v2095
    %v2097 = vpop.f32.mrf.mxu0
    %v2098 = vadd.f32 %v2009, %v2097
    %2099 = vmatmul.bf16.gmra.mxu0 %v1755
    %v2100 = vpop.f32.mrf.mxu0
    %v2101 = vadd.f32 %v2012, %v2100
    %v2102 = vpop.f32.mrf.mxu0
    %v2103 = vadd.f32 %v2014, %v2102
    %2104 = vmatmul.bf16.gmra.mxu0 %v1757
    %v2105 = vpop.f32.mrf.mxu0
    %v2106 = vadd.f32 %v2017, %v2105
    %v2107 = vpop.f32.mrf.mxu0
    %v2108 = vadd.f32 %v2019, %v2107
    %2109 = vmatmul.bf16.gmra.mxu0 %v1759
    %v2110 = vpop.f32.mrf.mxu0
    %v2111 = vadd.f32 %v2022, %v2110
    %v2112 = vpop.f32.mrf.mxu0
    %v2113 = vadd.f32 %v2024, %v2112
    %2114 = vmatmul.bf16.gmra.mxu0 %v1761
    %v2115 = vpop.f32.mrf.mxu0
    %v2116 = vadd.f32 %v2027, %v2115
    %v2117 = vpop.f32.mrf.mxu0
    %v2118 = vadd.f32 %v2029, %v2117
    %2119 = vmatmul.bf16.gmra.mxu0 %v1763
    %v2120 = vpop.f32.mrf.mxu0
    %v2121 = vadd.f32 %v2032, %v2120
    %v2122 = vpop.f32.mrf.mxu0
    %v2123 = vadd.f32 %v2034, %v2122
    %2124 = vmatmul.bf16.gmra.mxu0 %v1765
    %v2125 = vpop.f32.mrf.mxu0
    %v2126 = vadd.f32 %v2037, %v2125
    %v2127 = vpop.f32.mrf.mxu0
    %v2128 = vadd.f32 %v2039, %v2127
    %2129 = vmatmul.bf16.gmra.mxu0 %v1767
    %v2130 = vpop.f32.mrf.mxu0
    %v2131 = vadd.f32 %v2042, %v2130
    %v2132 = vpop.f32.mrf.mxu0
    %v2133 = vadd.f32 %v2044, %v2132
    %2134 = vmatmul.bf16.gmra.mxu0 %v1769
    %v2135 = vpop.f32.mrf.mxu0
    %v2136 = vadd.f32 %v2047, %v2135
    %v2137 = vpop.f32.mrf.mxu0
    %v2138 = vadd.f32 %v2049, %v2137
    %2139 = vmatmul.bf16.gmra.mxu0 %v1771
    %v2140 = vpop.f32.mrf.mxu0
    %v2141 = vadd.f32 %v2052, %v2140
    %v2142 = vpop.f32.mrf.mxu0
    %v2143 = vadd.f32 %v2054, %v2142
    %2144 = vmatmul.bf16.gmra.mxu0 %v1773
    %v2145 = vpop.f32.mrf.mxu0
    %v2146 = vadd.f32 %v2057, %v2145
    %v2147 = vpop.f32.mrf.mxu0
    %v2148 = vadd.f32 %v2059, %v2147
    %2149 = vdwg.mxu0
    %2150 = vmatpush.bf16.msra.mxu0 %v1923
    %2151 = vmatpush.bf16.msra.mxu0 %v1921
    %2152 = vmatpush.bf16.msra.mxu0 %v1919
    %2153 = vmatpush.bf16.msra.mxu0 %v1917
    %2154 = vmatpush.bf16.msra.mxu0 %v1915
    %2155 = vmatpush.bf16.msra.mxu0 %v1913
    %2156 = vmatpush.bf16.msra.mxu0 %v1911
    %2157 = vmatpush.bf16.msra.mxu0 %v1909
    %2158 = vmatmul.bf16.gmra.mxu0 %v1742
    %v2159 = vpop.f32.mrf.mxu0
    %v2160 = vadd.f32 %v1809, %v2159
    %v2161 = vpop.f32.mrf.mxu0
    %v2162 = vadd.f32 %v1809, %v2161
    %2163 = vmatmul.bf16.gmra.mxu0 %v1744
    %v2164 = vpop.f32.mrf.mxu0
    %v2165 = vadd.f32 %v1809, %v2164
    %v2166 = vpop.f32.mrf.mxu0
    %v2167 = vadd.f32 %v1809, %v2166
    %2168 = vmatmul.bf16.gmra.mxu0 %v1746
    %v2169 = vpop.f32.mrf.mxu0
    %v2170 = vadd.f32 %v1809, %v2169
    %v2171 = vpop.f32.mrf.mxu0
    %v2172 = vadd.f32 %v1809, %v2171
    %2173 = vmatmul.bf16.gmra.mxu0 %v1748
    %v2174 = vpop.f32.mrf.mxu0
    %v2175 = vadd.f32 %v1809, %v2174
    %v2176 = vpop.f32.mrf.mxu0
    %v2177 = vadd.f32 %v1809, %v2176
    %2178 = vmatmul.bf16.gmra.mxu0 %v1750
    %v2179 = vpop.f32.mrf.mxu0
    %v2180 = vadd.f32 %v1809, %v2179
    %v2181 = vpop.f32.mrf.mxu0
    %v2182 = vadd.f32 %v1809, %v2181
    %2183 = vmatmul.bf16.gmra.mxu0 %v1752
    %v2184 = vpop.f32.mrf.mxu0
    %v2185 = vadd.f32 %v1809, %v2184
    %v2186 = vpop.f32.mrf.mxu0
    %v2187 = vadd.f32 %v1809, %v2186
    %2188 = vmatmul.bf16.gmra.mxu0 %v1754
    %v2189 = vpop.f32.mrf.mxu0
    %v2190 = vadd.f32 %v1809, %v2189
    %v2191 = vpop.f32.mrf.mxu0
    %v2192 = vadd.f32 %v1809, %v2191
    %2193 = vmatmul.bf16.gmra.mxu0 %v1756
    %v2194 = vpop.f32.mrf.mxu0
    %v2195 = vadd.f32 %v1809, %v2194
    %v2196 = vpop.f32.mrf.mxu0
    %v2197 = vadd.f32 %v1809, %v2196
    %2198 = vmatmul.bf16.gmra.mxu0 %v1758
    %v2199 = vpop.f32.mrf.mxu0
    %v2200 = vadd.f32 %v1809, %v2199
    %v2201 = vpop.f32.mrf.mxu0
    %v2202 = vadd.f32 %v1809, %v2201
    %2203 = vmatmul.bf16.gmra.mxu0 %v1760
    %v2204 = vpop.f32.mrf.mxu0
    %v2205 = vadd.f32 %v1809, %v2204
    %v2206 = vpop.f32.mrf.mxu0
    %v2207 = vadd.f32 %v1809, %v2206
    %2208 = vmatmul.bf16.gmra.mxu0 %v1762
    %v2209 = vpop.f32.mrf.mxu0
    %v2210 = vadd.f32 %v1809, %v2209
    %v2211 = vpop.f32.mrf.mxu0
    %v2212 = vadd.f32 %v1809, %v2211
    %2213 = vmatmul.bf16.gmra.mxu0 %v1764
    %v2214 = vpop.f32.mrf.mxu0
    %v2215 = vadd.f32 %v1809, %v2214
    %v2216 = vpop.f32.mrf.mxu0
    %v2217 = vadd.f32 %v1809, %v2216
    %2218 = vmatmul.bf16.gmra.mxu0 %v1766
    %v2219 = vpop.f32.mrf.mxu0
    %v2220 = vadd.f32 %v1809, %v2219
    %v2221 = vpop.f32.mrf.mxu0
    %v2222 = vadd.f32 %v1809, %v2221
    %2223 = vmatmul.bf16.gmra.mxu0 %v1768
    %v2224 = vpop.f32.mrf.mxu0
    %v2225 = vadd.f32 %v1809, %v2224
    %v2226 = vpop.f32.mrf.mxu0
    %v2227 = vadd.f32 %v1809, %v2226
    %2228 = vmatmul.bf16.gmra.mxu0 %v1770
    %v2229 = vpop.f32.mrf.mxu0
    %v2230 = vadd.f32 %v1809, %v2229
    %v2231 = vpop.f32.mrf.mxu0
    %v2232 = vadd.f32 %v1809, %v2231
    %2233 = vmatmul.bf16.gmra.mxu0 %v1772
    %v2234 = vpop.f32.mrf.mxu0
    %v2235 = vadd.f32 %v1809, %v2234
    %v2236 = vpop.f32.mrf.mxu0
    %v2237 = vadd.f32 %v1809, %v2236
    %2238 = vdwg.mxu0
    %2239 = vmatpush.bf16.msra.mxu0 %v1939
    %2240 = vmatpush.bf16.msra.mxu0 %v1937
    %2241 = vmatpush.bf16.msra.mxu0 %v1935
    %2242 = vmatpush.bf16.msra.mxu0 %v1933
    %2243 = vmatpush.bf16.msra.mxu0 %v1931
    %2244 = vmatpush.bf16.msra.mxu0 %v1929
    %2245 = vmatpush.bf16.msra.mxu0 %v1927
    %2246 = vmatpush.bf16.msra.mxu0 %v1925
    %2247 = vmatmul.bf16.gmra.mxu0 %v1743
    %v2248 = vpop.f32.mrf.mxu0
    %v2249 = vadd.f32 %v2160, %v2248
    %v2250 = vpop.f32.mrf.mxu0
    %v2251 = vadd.f32 %v2162, %v2250
    %2252 = vmatmul.bf16.gmra.mxu0 %v1745
    %v2253 = vpop.f32.mrf.mxu0
    %v2254 = vadd.f32 %v2165, %v2253
    %v2255 = vpop.f32.mrf.mxu0
    %v2256 = vadd.f32 %v2167, %v2255
    %2257 = vmatmul.bf16.gmra.mxu0 %v1747
    %v2258 = vpop.f32.mrf.mxu0
    %v2259 = vadd.f32 %v2170, %v2258
    %v2260 = vpop.f32.mrf.mxu0
    %v2261 = vadd.f32 %v2172, %v2260
    %2262 = vmatmul.bf16.gmra.mxu0 %v1749
    %v2263 = vpop.f32.mrf.mxu0
    %v2264 = vadd.f32 %v2175, %v2263
    %v2265 = vpop.f32.mrf.mxu0
    %v2266 = vadd.f32 %v2177, %v2265
    %2267 = vmatmul.bf16.gmra.mxu0 %v1751
    %v2268 = vpop.f32.mrf.mxu0
    %v2269 = vadd.f32 %v2180, %v2268
    %v2270 = vpop.f32.mrf.mxu0
    %v2271 = vadd.f32 %v2182, %v2270
    %2272 = vmatmul.bf16.gmra.mxu0 %v1753
    %v2273 = vpop.f32.mrf.mxu0
    %v2274 = vadd.f32 %v2185, %v2273
    %v2275 = vpop.f32.mrf.mxu0
    %v2276 = vadd.f32 %v2187, %v2275
    %2277 = vmatmul.bf16.gmra.mxu0 %v1755
    %v2278 = vpop.f32.mrf.mxu0
    %v2279 = vadd.f32 %v2190, %v2278
    %v2280 = vpop.f32.mrf.mxu0
    %v2281 = vadd.f32 %v2192, %v2280
    %2282 = vmatmul.bf16.gmra.mxu0 %v1757
    %v2283 = vpop.f32.mrf.mxu0
    %v2284 = vadd.f32 %v2195, %v2283
    %v2285 = vpop.f32.mrf.mxu0
    %v2286 = vadd.f32 %v2197, %v2285
    %2287 = vmatmul.bf16.gmra.mxu0 %v1759
    %v2288 = vpop.f32.mrf.mxu0
    %v2289 = vadd.f32 %v2200, %v2288
    %v2290 = vpop.f32.mrf.mxu0
    %v2291 = vadd.f32 %v2202, %v2290
    %2292 = vmatmul.bf16.gmra.mxu0 %v1761
    %v2293 = vpop.f32.mrf.mxu0
    %v2294 = vadd.f32 %v2205, %v2293
    %v2295 = vpop.f32.mrf.mxu0
    %v2296 = vadd.f32 %v2207, %v2295
    %2297 = vmatmul.bf16.gmra.mxu0 %v1763
    %v2298 = vpop.f32.mrf.mxu0
    %v2299 = vadd.f32 %v2210, %v2298
    %v2300 = vpop.f32.mrf.mxu0
    %v2301 = vadd.f32 %v2212, %v2300
    %2302 = vmatmul.bf16.gmra.mxu0 %v1765
    %v2303 = vpop.f32.mrf.mxu0
    %v2304 = vadd.f32 %v2215, %v2303
    %v2305 = vpop.f32.mrf.mxu0
    %v2306 = vadd.f32 %v2217, %v2305
    %2307 = vmatmul.bf16.gmra.mxu0 %v1767
    %v2308 = vpop.f32.mrf.mxu0
    %v2309 = vadd.f32 %v2220, %v2308
    %v2310 = vpop.f32.mrf.mxu0
    %v2311 = vadd.f32 %v2222, %v2310
    %2312 = vmatmul.bf16.gmra.mxu0 %v1769
    %v2313 = vpop.f32.mrf.mxu0
    %v2314 = vadd.f32 %v2225, %v2313
    %v2315 = vpop.f32.mrf.mxu0
    %v2316 = vadd.f32 %v2227, %v2315
    %2317 = vmatmul.bf16.gmra.mxu0 %v1771
    %v2318 = vpop.f32.mrf.mxu0
    %v2319 = vadd.f32 %v2230, %v2318
    %v2320 = vpop.f32.mrf.mxu0
    %v2321 = vadd.f32 %v2232, %v2320
    %2322 = vmatmul.bf16.gmra.mxu0 %v1773
    %v2323 = vpop.f32.mrf.mxu0
    %v2324 = vadd.f32 %v2235, %v2323
    %v2325 = vpop.f32.mrf.mxu0
    %v2326 = vadd.f32 %v2237, %v2325
    %2327 = vdwg.mxu0
    %v2328 = vpack.c.bf16 %v2249, %v2071
    %v2329 = vpack.c.bf16 %v2251, %v2073
    %v2330 = vpack.c.bf16 %v2254, %v2076
    %v2331 = vpack.c.bf16 %v2256, %v2078
    %v2332 = vpack.c.bf16 %v2259, %v2081
    %v2333 = vpack.c.bf16 %v2261, %v2083
    %v2334 = vpack.c.bf16 %v2264, %v2086
    %v2335 = vpack.c.bf16 %v2266, %v2088
    %v2336 = vpack.c.bf16 %v2269, %v2091
    %v2337 = vpack.c.bf16 %v2271, %v2093
    %v2338 = vpack.c.bf16 %v2274, %v2096
    %v2339 = vpack.c.bf16 %v2276, %v2098
    %v2340 = vpack.c.bf16 %v2279, %v2101
    %v2341 = vpack.c.bf16 %v2281, %v2103
    %v2342 = vpack.c.bf16 %v2284, %v2106
    %v2343 = vpack.c.bf16 %v2286, %v2108
    %v2344 = vpack.c.bf16 %v2289, %v2111
    %v2345 = vpack.c.bf16 %v2291, %v2113
    %v2346 = vpack.c.bf16 %v2294, %v2116
    %v2347 = vpack.c.bf16 %v2296, %v2118
    %v2348 = vpack.c.bf16 %v2299, %v2121
    %v2349 = vpack.c.bf16 %v2301, %v2123
    %v2350 = vpack.c.bf16 %v2304, %v2126
    %v2351 = vpack.c.bf16 %v2306, %v2128
    %v2352 = vpack.c.bf16 %v2309, %v2131
    %v2353 = vpack.c.bf16 %v2311, %v2133
    %v2354 = vpack.c.bf16 %v2314, %v2136
    %v2355 = vpack.c.bf16 %v2316, %v2138
    %v2356 = vpack.c.bf16 %v2319, %v2141
    %v2357 = vpack.c.bf16 %v2321, %v2143
    %v2358 = vpack.c.bf16 %v2324, %v2146
    %v2359 = vpack.c.bf16 %v2326, %v2148
    %v2360 = vunpack.c.l.bf16 %v2328
    %v2361 = vunpack.c.h.bf16 %v2328
    %v2362 = vunpack.c.l.bf16 %v2329
    %v2363 = vunpack.c.h.bf16 %v2329
    %v2364 = vunpack.c.l.bf16 %v2330
    %v2365 = vunpack.c.h.bf16 %v2330
    %v2366 = vunpack.c.l.bf16 %v2331
    %v2367 = vunpack.c.h.bf16 %v2331
    %v2368 = vunpack.c.l.bf16 %v2332
    %v2369 = vunpack.c.h.bf16 %v2332
    %v2370 = vunpack.c.l.bf16 %v2333
    %v2371 = vunpack.c.h.bf16 %v2333
    %v2372 = vunpack.c.l.bf16 %v2334
    %v2373 = vunpack.c.h.bf16 %v2334
    %v2374 = vunpack.c.l.bf16 %v2335
    %v2375 = vunpack.c.h.bf16 %v2335
    %v2376 = vunpack.c.l.bf16 %v2336
    %v2377 = vunpack.c.h.bf16 %v2336
    %v2378 = vunpack.c.l.bf16 %v2337
    %v2379 = vunpack.c.h.bf16 %v2337
    %v2380 = vunpack.c.l.bf16 %v2338
    %v2381 = vunpack.c.h.bf16 %v2338
    %v2382 = vunpack.c.l.bf16 %v2339
    %v2383 = vunpack.c.h.bf16 %v2339
    %v2384 = vunpack.c.l.bf16 %v2340
    %v2385 = vunpack.c.h.bf16 %v2340
    %v2386 = vunpack.c.l.bf16 %v2341
    %v2387 = vunpack.c.h.bf16 %v2341
    %v2388 = vunpack.c.l.bf16 %v2342
    %v2389 = vunpack.c.h.bf16 %v2342
    %v2390 = vunpack.c.l.bf16 %v2343
    %v2391 = vunpack.c.h.bf16 %v2343
    %v2392 = vunpack.c.l.bf16 %v2344
    %v2393 = vunpack.c.h.bf16 %v2344
    %v2394 = vunpack.c.l.bf16 %v2345
    %v2395 = vunpack.c.h.bf16 %v2345
    %v2396 = vunpack.c.l.bf16 %v2346
    %v2397 = vunpack.c.h.bf16 %v2346
    %v2398 = vunpack.c.l.bf16 %v2347
    %v2399 = vunpack.c.h.bf16 %v2347
    %v2400 = vunpack.c.l.bf16 %v2348
    %v2401 = vunpack.c.h.bf16 %v2348
    %v2402 = vunpack.c.l.bf16 %v2349
    %v2403 = vunpack.c.h.bf16 %v2349
    %v2404 = vunpack.c.l.bf16 %v2350
    %v2405 = vunpack.c.h.bf16 %v2350
    %v2406 = vunpack.c.l.bf16 %v2351
    %v2407 = vunpack.c.h.bf16 %v2351
    %v2408 = vunpack.c.l.bf16 %v2352
    %v2409 = vunpack.c.h.bf16 %v2352
    %v2410 = vunpack.c.l.bf16 %v2353
    %v2411 = vunpack.c.h.bf16 %v2353
    %v2412 = vunpack.c.l.bf16 %v2354
    %v2413 = vunpack.c.h.bf16 %v2354
    %v2414 = vunpack.c.l.bf16 %v2355
    %v2415 = vunpack.c.h.bf16 %v2355
    %v2416 = vunpack.c.l.bf16 %v2356
    %v2417 = vunpack.c.h.bf16 %v2356
    %v2418 = vunpack.c.l.bf16 %v2357
    %v2419 = vunpack.c.h.bf16 %v2357
    %v2420 = vunpack.c.l.bf16 %v2358
    %v2421 = vunpack.c.h.bf16 %v2358
    %v2422 = vunpack.c.l.bf16 %v2359
    %v2423 = vunpack.c.h.bf16 %v2359
    %v2424 = vmax.f32 %v2360, 0.0
    %v2425 = vmax.f32 %v2361, 0.0
    %v2426 = vmax.f32 %v2362, 0.0
    %v2427 = vmax.f32 %v2363, 0.0
    %v2428 = vmax.f32 %v2364, 0.0
    %v2429 = vmax.f32 %v2365, 0.0
    %v2430 = vmax.f32 %v2366, 0.0
    %v2431 = vmax.f32 %v2367, 0.0
    %v2432 = vmax.f32 %v2368, 0.0
    %v2433 = vmax.f32 %v2369, 0.0
    %v2434 = vmax.f32 %v2370, 0.0
    %v2435 = vmax.f32 %v2371, 0.0
    %v2436 = vmax.f32 %v2372, 0.0
    %v2437 = vmax.f32 %v2373, 0.0
    %v2438 = vmax.f32 %v2374, 0.0
    %v2439 = vmax.f32 %v2375, 0.0
    %v2440 = vmax.f32 %v2376, 0.0
    %v2441 = vmax.f32 %v2377, 0.0
    %v2442 = vmax.f32 %v2378, 0.0
    %v2443 = vmax.f32 %v2379, 0.0
    %v2444 = vmax.f32 %v2380, 0.0
    %v2445 = vmax.f32 %v2381, 0.0
    %v2446 = vmax.f32 %v2382, 0.0
    %v2447 = vmax.f32 %v2383, 0.0
    %v2448 = vmax.f32 %v2384, 0.0
    %v2449 = vmax.f32 %v2385, 0.0
    %v2450 = vmax.f32 %v2386, 0.0
    %v2451 = vmax.f32 %v2387, 0.0
    %v2452 = vmax.f32 %v2388, 0.0
    %v2453 = vmax.f32 %v2389, 0.0
    %v2454 = vmax.f32 %v2390, 0.0
    %v2455 = vmax.f32 %v2391, 0.0
    %v2456 = vmax.f32 %v2392, 0.0
    %v2457 = vmax.f32 %v2393, 0.0
    %v2458 = vmax.f32 %v2394, 0.0
    %v2459 = vmax.f32 %v2395, 0.0
    %v2460 = vmax.f32 %v2396, 0.0
    %v2461 = vmax.f32 %v2397, 0.0
    %v2462 = vmax.f32 %v2398, 0.0
    %v2463 = vmax.f32 %v2399, 0.0
    %v2464 = vmax.f32 %v2400, 0.0
    %v2465 = vmax.f32 %v2401, 0.0
    %v2466 = vmax.f32 %v2402, 0.0
    %v2467 = vmax.f32 %v2403, 0.0
    %v2468 = vmax.f32 %v2404, 0.0
    %v2469 = vmax.f32 %v2405, 0.0
    %v2470 = vmax.f32 %v2406, 0.0
    %v2471 = vmax.f32 %v2407, 0.0
    %v2472 = vmax.f32 %v2408, 0.0
    %v2473 = vmax.f32 %v2409, 0.0
    %v2474 = vmax.f32 %v2410, 0.0
    %v2475 = vmax.f32 %v2411, 0.0
    %v2476 = vmax.f32 %v2412, 0.0
    %v2477 = vmax.f32 %v2413, 0.0
    %v2478 = vmax.f32 %v2414, 0.0
    %v2479 = vmax.f32 %v2415, 0.0
    %v2480 = vmax.f32 %v2416, 0.0
    %v2481 = vmax.f32 %v2417, 0.0
    %v2482 = vmax.f32 %v2418, 0.0
    %v2483 = vmax.f32 %v2419, 0.0
    %v2484 = vmax.f32 %v2420, 0.0
    %v2485 = vmax.f32 %v2421, 0.0
    %v2486 = vmax.f32 %v2422, 0.0
    %v2487 = vmax.f32 %v2423, 0.0
    %v2488 = vpack.c.bf16 %v2425, %v2424
    %v2489 = vpack.c.bf16 %v2427, %v2426
    %v2490 = vpack.c.bf16 %v2429, %v2428
    %v2491 = vpack.c.bf16 %v2431, %v2430
    %v2492 = vpack.c.bf16 %v2433, %v2432
    %v2493 = vpack.c.bf16 %v2435, %v2434
    %v2494 = vpack.c.bf16 %v2437, %v2436
    %v2495 = vpack.c.bf16 %v2439, %v2438
    %v2496 = vpack.c.bf16 %v2441, %v2440
    %v2497 = vpack.c.bf16 %v2443, %v2442
    %v2498 = vpack.c.bf16 %v2445, %v2444
    %v2499 = vpack.c.bf16 %v2447, %v2446
    %v2500 = vpack.c.bf16 %v2449, %v2448
    %v2501 = vpack.c.bf16 %v2451, %v2450
    %v2502 = vpack.c.bf16 %v2453, %v2452
    %v2503 = vpack.c.bf16 %v2455, %v2454
    %v2504 = vpack.c.bf16 %v2457, %v2456
    %v2505 = vpack.c.bf16 %v2459, %v2458
    %v2506 = vpack.c.bf16 %v2461, %v2460
    %v2507 = vpack.c.bf16 %v2463, %v2462
    %v2508 = vpack.c.bf16 %v2465, %v2464
    %v2509 = vpack.c.bf16 %v2467, %v2466
    %v2510 = vpack.c.bf16 %v2469, %v2468
    %v2511 = vpack.c.bf16 %v2471, %v2470
    %v2512 = vpack.c.bf16 %v2473, %v2472
    %v2513 = vpack.c.bf16 %v2475, %v2474
    %v2514 = vpack.c.bf16 %v2477, %v2476
    %v2515 = vpack.c.bf16 %v2479, %v2478
    %v2516 = vpack.c.bf16 %v2481, %v2480
    %v2517 = vpack.c.bf16 %v2483, %v2482
    %v2518 = vpack.c.bf16 %v2485, %v2484
    %v2519 = vpack.c.bf16 %v2487, %v2486
    %v2520 = vunpack.c.l.bf16 %v2488
    %v2521 = vunpack.c.h.bf16 %v2488
    %v2522 = vunpack.c.l.bf16 %v2489
    %v2523 = vunpack.c.h.bf16 %v2489
    %v2524 = vunpack.c.l.bf16 %v2490
    %v2525 = vunpack.c.h.bf16 %v2490
    %v2526 = vunpack.c.l.bf16 %v2491
    %v2527 = vunpack.c.h.bf16 %v2491
    %v2528 = vunpack.c.l.bf16 %v2492
    %v2529 = vunpack.c.h.bf16 %v2492
    %v2530 = vunpack.c.l.bf16 %v2493
    %v2531 = vunpack.c.h.bf16 %v2493
    %v2532 = vunpack.c.l.bf16 %v2494
    %v2533 = vunpack.c.h.bf16 %v2494
    %v2534 = vunpack.c.l.bf16 %v2495
    %v2535 = vunpack.c.h.bf16 %v2495
    %v2536 = vunpack.c.l.bf16 %v2496
    %v2537 = vunpack.c.h.bf16 %v2496
    %v2538 = vunpack.c.l.bf16 %v2497
    %v2539 = vunpack.c.h.bf16 %v2497
    %v2540 = vunpack.c.l.bf16 %v2498
    %v2541 = vunpack.c.h.bf16 %v2498
    %v2542 = vunpack.c.l.bf16 %v2499
    %v2543 = vunpack.c.h.bf16 %v2499
    %v2544 = vunpack.c.l.bf16 %v2500
    %v2545 = vunpack.c.h.bf16 %v2500
    %v2546 = vunpack.c.l.bf16 %v2501
    %v2547 = vunpack.c.h.bf16 %v2501
    %v2548 = vunpack.c.l.bf16 %v2502
    %v2549 = vunpack.c.h.bf16 %v2502
    %v2550 = vunpack.c.l.bf16 %v2503
    %v2551 = vunpack.c.h.bf16 %v2503
    %v2552 = vunpack.c.l.bf16 %v2504
    %v2553 = vunpack.c.h.bf16 %v2504
    %v2554 = vunpack.c.l.bf16 %v2505
    %v2555 = vunpack.c.h.bf16 %v2505
    %v2556 = vunpack.c.l.bf16 %v2506
    %v2557 = vunpack.c.h.bf16 %v2506
    %v2558 = vunpack.c.l.bf16 %v2507
    %v2559 = vunpack.c.h.bf16 %v2507
    %v2560 = vunpack.c.l.bf16 %v2508
    %v2561 = vunpack.c.h.bf16 %v2508
    %v2562 = vunpack.c.l.bf16 %v2509
    %v2563 = vunpack.c.h.bf16 %v2509
    %v2564 = vunpack.c.l.bf16 %v2510
    %v2565 = vunpack.c.h.bf16 %v2510
    %v2566 = vunpack.c.l.bf16 %v2511
    %v2567 = vunpack.c.h.bf16 %v2511
    %v2568 = vunpack.c.l.bf16 %v2512
    %v2569 = vunpack.c.h.bf16 %v2512
    %v2570 = vunpack.c.l.bf16 %v2513
    %v2571 = vunpack.c.h.bf16 %v2513
    %v2572 = vunpack.c.l.bf16 %v2514
    %v2573 = vunpack.c.h.bf16 %v2514
    %v2574 = vunpack.c.l.bf16 %v2515
    %v2575 = vunpack.c.h.bf16 %v2515
    %v2576 = vunpack.c.l.bf16 %v2516
    %v2577 = vunpack.c.h.bf16 %v2516
    %v2578 = vunpack.c.l.bf16 %v2517
    %v2579 = vunpack.c.h.bf16 %v2517
    %v2580 = vunpack.c.l.bf16 %v2518
    %v2581 = vunpack.c.h.bf16 %v2518
    %v2582 = vunpack.c.l.bf16 %v2519
    %v2583 = vunpack.c.h.bf16 %v2519
    %v2584 = vld [vmem:[%s9] sm:$0x3]
    %v2586 = vperm.slane %v2584, 0
    %v2587 = vperm.slane %v2584, 1
    %v2590 = vmul.f32 %v2520, %v2586
    %v2591 = vmul.f32 %v2521, %v2587
    %v2592 = vmul.f32 %v2522, %v2586
    %v2593 = vmul.f32 %v2523, %v2587
    %v2594 = vmul.f32 %v2524, %v2586
    %v2595 = vmul.f32 %v2525, %v2587
    %v2596 = vmul.f32 %v2526, %v2586
    %v2597 = vmul.f32 %v2527, %v2587
    %v2598 = vmul.f32 %v2528, %v2586
    %v2599 = vmul.f32 %v2529, %v2587
    %v2600 = vmul.f32 %v2530, %v2586
    %v2601 = vmul.f32 %v2531, %v2587
    %v2602 = vmul.f32 %v2532, %v2586
    %v2603 = vmul.f32 %v2533, %v2587
    %v2604 = vmul.f32 %v2534, %v2586
    %v2605 = vmul.f32 %v2535, %v2587
    %v2606 = vmul.f32 %v2536, %v2586
    %v2607 = vmul.f32 %v2537, %v2587
    %v2608 = vmul.f32 %v2538, %v2586
    %v2609 = vmul.f32 %v2539, %v2587
    %v2610 = vmul.f32 %v2540, %v2586
    %v2611 = vmul.f32 %v2541, %v2587
    %v2612 = vmul.f32 %v2542, %v2586
    %v2613 = vmul.f32 %v2543, %v2587
    %v2614 = vmul.f32 %v2544, %v2586
    %v2615 = vmul.f32 %v2545, %v2587
    %v2616 = vmul.f32 %v2546, %v2586
    %v2617 = vmul.f32 %v2547, %v2587
    %v2618 = vmul.f32 %v2548, %v2586
    %v2619 = vmul.f32 %v2549, %v2587
    %v2620 = vmul.f32 %v2550, %v2586
    %v2621 = vmul.f32 %v2551, %v2587
    %v2622 = vmul.f32 %v2552, %v2586
    %v2623 = vmul.f32 %v2553, %v2587
    %v2624 = vmul.f32 %v2554, %v2586
    %v2625 = vmul.f32 %v2555, %v2587
    %v2626 = vmul.f32 %v2556, %v2586
    %v2627 = vmul.f32 %v2557, %v2587
    %v2628 = vmul.f32 %v2558, %v2586
    %v2629 = vmul.f32 %v2559, %v2587
    %v2630 = vmul.f32 %v2560, %v2586
    %v2631 = vmul.f32 %v2561, %v2587
    %v2632 = vmul.f32 %v2562, %v2586
    %v2633 = vmul.f32 %v2563, %v2587
    %v2634 = vmul.f32 %v2564, %v2586
    %v2635 = vmul.f32 %v2565, %v2587
    %v2636 = vmul.f32 %v2566, %v2586
    %v2637 = vmul.f32 %v2567, %v2587
    %v2638 = vmul.f32 %v2568, %v2586
    %v2639 = vmul.f32 %v2569, %v2587
    %v2640 = vmul.f32 %v2570, %v2586
    %v2641 = vmul.f32 %v2571, %v2587
    %v2642 = vmul.f32 %v2572, %v2586
    %v2643 = vmul.f32 %v2573, %v2587
    %v2644 = vmul.f32 %v2574, %v2586
    %v2645 = vmul.f32 %v2575, %v2587
    %v2646 = vmul.f32 %v2576, %v2586
    %v2647 = vmul.f32 %v2577, %v2587
    %v2648 = vmul.f32 %v2578, %v2586
    %v2649 = vmul.f32 %v2579, %v2587
    %v2650 = vmul.f32 %v2580, %v2586
    %v2651 = vmul.f32 %v2581, %v2587
    %v2652 = vmul.f32 %v2582, %v2586
    %v2653 = vmul.f32 %v2583, %v2587
    %v2654 = vadd.f32 %v2590, %v2591
    %2655 = vadd.xlane.f32.xlu0 %v2654
    %v2656 = vpop.xlane.xlu0 %2655
    %v2657 = vadd.f32 %v2592, %v2593
    %2658 = vadd.xlane.f32.xlu0 %v2657
    %v2659 = vpop.xlane.xlu0 %2658
    %v2660 = vadd.f32 %v2594, %v2595
    %2661 = vadd.xlane.f32.xlu0 %v2660
    %v2662 = vpop.xlane.xlu0 %2661
    %v2663 = vadd.f32 %v2596, %v2597
    %2664 = vadd.xlane.f32.xlu0 %v2663
    %v2665 = vpop.xlane.xlu0 %2664
    %v2666 = vadd.f32 %v2598, %v2599
    %2667 = vadd.xlane.f32.xlu0 %v2666
    %v2668 = vpop.xlane.xlu0 %2667
    %v2669 = vadd.f32 %v2600, %v2601
    %2670 = vadd.xlane.f32.xlu0 %v2669
    %v2671 = vpop.xlane.xlu0 %2670
    %v2672 = vadd.f32 %v2602, %v2603
    %2673 = vadd.xlane.f32.xlu0 %v2672
    %v2674 = vpop.xlane.xlu0 %2673
    %v2675 = vadd.f32 %v2604, %v2605
    %2676 = vadd.xlane.f32.xlu0 %v2675
    %v2677 = vpop.xlane.xlu0 %2676
    %v2678 = vadd.f32 %v2606, %v2607
    %2679 = vadd.xlane.f32.xlu0 %v2678
    %v2680 = vpop.xlane.xlu0 %2679
    %v2681 = vadd.f32 %v2608, %v2609
    %2682 = vadd.xlane.f32.xlu0 %v2681
    %v2683 = vpop.xlane.xlu0 %2682
    %v2684 = vadd.f32 %v2610, %v2611
    %2685 = vadd.xlane.f32.xlu0 %v2684
    %v2686 = vpop.xlane.xlu0 %2685
    %v2687 = vadd.f32 %v2612, %v2613
    %2688 = vadd.xlane.f32.xlu0 %v2687
    %v2689 = vpop.xlane.xlu0 %2688
    %v2690 = vadd.f32 %v2614, %v2615
    %2691 = vadd.xlane.f32.xlu0 %v2690
    %v2692 = vpop.xlane.xlu0 %2691
    %v2693 = vadd.f32 %v2616, %v2617
    %2694 = vadd.xlane.f32.xlu0 %v2693
    %v2695 = vpop.xlane.xlu0 %2694
    %v2696 = vadd.f32 %v2618, %v2619
    %2697 = vadd.xlane.f32.xlu0 %v2696
    %v2698 = vpop.xlane.xlu0 %2697
    %v2699 = vadd.f32 %v2620, %v2621
    %2700 = vadd.xlane.f32.xlu0 %v2699
    %v2701 = vpop.xlane.xlu0 %2700
    %v2702 = vadd.f32 %v2622, %v2623
    %2703 = vadd.xlane.f32.xlu0 %v2702
    %v2704 = vpop.xlane.xlu0 %2703
    %v2705 = vadd.f32 %v2624, %v2625
    %2706 = vadd.xlane.f32.xlu0 %v2705
    %v2707 = vpop.xlane.xlu0 %2706
    %v2708 = vadd.f32 %v2626, %v2627
    %2709 = vadd.xlane.f32.xlu0 %v2708
    %v2710 = vpop.xlane.xlu0 %2709
    %v2711 = vadd.f32 %v2628, %v2629
    %2712 = vadd.xlane.f32.xlu0 %v2711
    %v2713 = vpop.xlane.xlu0 %2712
    %v2714 = vadd.f32 %v2630, %v2631
    %2715 = vadd.xlane.f32.xlu0 %v2714
    %v2716 = vpop.xlane.xlu0 %2715
    %v2717 = vadd.f32 %v2632, %v2633
    %2718 = vadd.xlane.f32.xlu0 %v2717
    %v2719 = vpop.xlane.xlu0 %2718
    %v2720 = vadd.f32 %v2634, %v2635
    %2721 = vadd.xlane.f32.xlu0 %v2720
    %v2722 = vpop.xlane.xlu0 %2721
    %v2723 = vadd.f32 %v2636, %v2637
    %2724 = vadd.xlane.f32.xlu0 %v2723
    %v2725 = vpop.xlane.xlu0 %2724
    %v2726 = vadd.f32 %v2638, %v2639
    %2727 = vadd.xlane.f32.xlu0 %v2726
    %v2728 = vpop.xlane.xlu0 %2727
    %v2729 = vadd.f32 %v2640, %v2641
    %2730 = vadd.xlane.f32.xlu0 %v2729
    %v2731 = vpop.xlane.xlu0 %2730
    %v2732 = vadd.f32 %v2642, %v2643
    %2733 = vadd.xlane.f32.xlu0 %v2732
    %v2734 = vpop.xlane.xlu0 %2733
    %v2735 = vadd.f32 %v2644, %v2645
    %2736 = vadd.xlane.f32.xlu0 %v2735
    %v2737 = vpop.xlane.xlu0 %2736
    %v2738 = vadd.f32 %v2646, %v2647
    %2739 = vadd.xlane.f32.xlu0 %v2738
    %v2740 = vpop.xlane.xlu0 %2739
    %v2741 = vadd.f32 %v2648, %v2649
    %2742 = vadd.xlane.f32.xlu0 %v2741
    %v2743 = vpop.xlane.xlu0 %2742
    %v2744 = vadd.f32 %v2650, %v2651
    %2745 = vadd.xlane.f32.xlu0 %v2744
    %v2746 = vpop.xlane.xlu0 %2745
    %v2747 = vadd.f32 %v2652, %v2653
    %2748 = vadd.xlane.f32.xlu0 %v2747
    %v2749 = vpop.xlane.xlu0 %2748
    %v2750 = vld [vmem:[#allocation2] sm:$0x1]
    %v2752 = vperm.slane %v2750, 0
    %2753 = vset.pattern.permute.xlu0 0
    %2754 = vperm.xlu0 %2753, %v2752
    %v2755 = vpop.permute.xlu0 %2754
    %v2757 = vadd.f32 %v2656, %v2755
    %v2758 = vadd.f32 %v2659, %v2755
    %v2759 = vadd.f32 %v2662, %v2755
    %v2760 = vadd.f32 %v2665, %v2755
    %v2761 = vadd.f32 %v2668, %v2755
    %v2762 = vadd.f32 %v2671, %v2755
    %v2763 = vadd.f32 %v2674, %v2755
    %v2764 = vadd.f32 %v2677, %v2755
    %v2765 = vadd.f32 %v2680, %v2755
    %v2766 = vadd.f32 %v2683, %v2755
    %v2767 = vadd.f32 %v2686, %v2755
    %v2768 = vadd.f32 %v2689, %v2755
    %v2769 = vadd.f32 %v2692, %v2755
    %v2770 = vadd.f32 %v2695, %v2755
    %v2771 = vadd.f32 %v2698, %v2755
    %v2772 = vadd.f32 %v2701, %v2755
    %v2773 = vadd.f32 %v2704, %v2755
    %v2774 = vadd.f32 %v2707, %v2755
    %v2775 = vadd.f32 %v2710, %v2755
    %v2776 = vadd.f32 %v2713, %v2755
    %v2777 = vadd.f32 %v2716, %v2755
    %v2778 = vadd.f32 %v2719, %v2755
    %v2779 = vadd.f32 %v2722, %v2755
    %v2780 = vadd.f32 %v2725, %v2755
    %v2781 = vadd.f32 %v2728, %v2755
    %v2782 = vadd.f32 %v2731, %v2755
    %v2783 = vadd.f32 %v2734, %v2755
    %v2784 = vadd.f32 %v2737, %v2755
    %v2785 = vadd.f32 %v2740, %v2755
    %v2786 = vadd.f32 %v2743, %v2755
    %v2787 = vadd.f32 %v2746, %v2755
    %v2788 = vadd.f32 %v2749, %v2755
    %v2821 = vlaneseq
    %v2822 = vand.u32 %v2821, 127
    %v2823 = vperm.slane %v2757, %v2822
    %v2824 = vadd.s32 %v2822, 4294967288
    %v2825 = vperm.slane %v2758, %v2824
    %vm2826 = vcmask 130112
    %v2827 = vsel %vm2826, %v2825, %v2823
    %v2828 = vadd.s32 %v2822, 4294967280
    %v2829 = vperm.slane %v2759, %v2828
    %vm2830 = vcmask 195712
    %v2831 = vsel %vm2830, %v2829, %v2827
    %v2832 = vadd.s32 %v2822, 4294967272
    %v2833 = vperm.slane %v2760, %v2832
    %vm2834 = vcmask 261312
    %v2835 = vsel %vm2834, %v2833, %v2831
    %v2836 = vperm.slane %v2761, %v2822
    %v2837 = vperm.slane %v2762, %v2824
    %v2838 = vsel %vm2826, %v2837, %v2836
    %v2839 = vperm.slane %v2763, %v2828
    %v2840 = vsel %vm2830, %v2839, %v2838
    %v2841 = vperm.slane %v2764, %v2832
    %v2842 = vsel %vm2834, %v2841, %v2840
    %v2843 = vperm.slane %v2765, %v2822
    %v2844 = vperm.slane %v2766, %v2824
    %v2845 = vsel %vm2826, %v2844, %v2843
    %v2846 = vperm.slane %v2767, %v2828
    %v2847 = vsel %vm2830, %v2846, %v2845
    %v2848 = vperm.slane %v2768, %v2832
    %v2849 = vsel %vm2834, %v2848, %v2847
    %v2850 = vperm.slane %v2769, %v2822
    %v2851 = vperm.slane %v2770, %v2824
    %v2852 = vsel %vm2826, %v2851, %v2850
    %v2853 = vperm.slane %v2771, %v2828
    %v2854 = vsel %vm2830, %v2853, %v2852
    %v2855 = vperm.slane %v2772, %v2832
    %v2856 = vsel %vm2834, %v2855, %v2854
    %v2857 = vperm.slane %v2773, %v2822
    %v2858 = vperm.slane %v2774, %v2824
    %v2859 = vsel %vm2826, %v2858, %v2857
    %v2860 = vperm.slane %v2775, %v2828
    %v2861 = vsel %vm2830, %v2860, %v2859
    %v2862 = vperm.slane %v2776, %v2832
    %v2863 = vsel %vm2834, %v2862, %v2861
    %v2864 = vperm.slane %v2777, %v2822
    %v2865 = vperm.slane %v2778, %v2824
    %v2866 = vsel %vm2826, %v2865, %v2864
    %v2867 = vperm.slane %v2779, %v2828
    %v2868 = vsel %vm2830, %v2867, %v2866
    %v2869 = vperm.slane %v2780, %v2832
    %v2870 = vsel %vm2834, %v2869, %v2868
    %v2871 = vperm.slane %v2781, %v2822
    %v2872 = vperm.slane %v2782, %v2824
    %v2873 = vsel %vm2826, %v2872, %v2871
    %v2874 = vperm.slane %v2783, %v2828
    %v2875 = vsel %vm2830, %v2874, %v2873
    %v2876 = vperm.slane %v2784, %v2832
    %v2877 = vsel %vm2834, %v2876, %v2875
    %v2878 = vperm.slane %v2785, %v2822
    %v2879 = vperm.slane %v2786, %v2824
    %v2880 = vsel %vm2826, %v2879, %v2878
    %v2881 = vperm.slane %v2787, %v2828
    %v2882 = vsel %vm2830, %v2881, %v2880
    %v2883 = vperm.slane %v2788, %v2832
    %v2884 = vsel %vm2834, %v2883, %v2882
    %vm2885 = vcmask 1041409
    %v2886 = vsel %vm2885, %v2842, %v2835
    %vm2887 = vcmask 1042434
    %v2888 = vsel %vm2887, %v2849, %v2886
    %vm2889 = vcmask 1043459
    %v2890 = vsel %vm2889, %v2856, %v2888
    %vm2891 = vcmask 1044484
    %v2892 = vsel %vm2891, %v2863, %v2890
    %vm2893 = vcmask 1045509
    %v2894 = vsel %vm2893, %v2870, %v2892
    %vm2895 = vcmask 1046534
    %v2896 = vsel %vm2895, %v2877, %v2894
    %vm2897 = vcmask 1047559
    %v2898 = vsel %vm2897, %v2884, %v2896
    %vm2900 = vcmask 261120
    %2901 = vst.msk [vmem:[#allocation6] sm:$0xff] %vm2900, %v2898
    // Predicated region
    $region50: #{tpu_custom_call.1} parent=1 // pred_check
      _
    $region51: #{tpu_custom_call.1} parent=1 // pred_check_branch
      %2903 = sbr.rel (0) target = $region53
    $region52: #{tpu_custom_call.1} parent=1 // pred_region
      %2905 = vsyncadd [#allocation5], 0
      %s2907 = sshll.u32 [#allocation6], 4
      %s2908 = int_to_ptr.vmem [resolvable:$true] %s2907
      %s2909 = sshll.u32 %s11, 4
      %s2910 = int_to_ptr.hbm [resolvable:$true] %s2909
      %2912 = dma.vmem_to_hbm [thread:$0]  %s2908, 128, %s2910, [#allocation5]
    $region53: #{tpu_custom_call.1} parent=1 // pred_fallthru
      _
    // Predicated region
    $region54: #{tpu_custom_call.1} parent=1 // pred_check
      _
    $region55: #{tpu_custom_call.1} parent=1 // pred_check_branch
      %2914 = sbr.rel (0) target = $region57
    $region56: #{tpu_custom_call.1} parent=1 // pred_region
      %2916 = dma.done [#allocation5], 128
    $region57: #{tpu_custom_call.1} parent=1 // pred_fallthru
      _
    %2917 = vsyncpa [#allocation4], 1
    %2918 = vsyncpa [#allocation5], 1

</llo_original>
